<compile_context>
chip_gen: v7x
topology: tpu7x:2x2x1
jax: 0.10.0
libtpu: 0.0.40
codegen_flags: <defaults>
</compile_context>

<pallas_src>
import functools

import jax
import jax.numpy as jnp
import numpy as np
from jax.experimental import pallas as pl
from jax.experimental.pallas import tpu as pltpu


def _doubleconv_kernel(x_ref, w1_ref, b1_ref, w2_ref, b2_ref, o_ref, *, H, W, Wp):
    # x_ref : (Cin, Hp*Wp + 2) bf16  zero-padded image, flattened row-major (row stride Wp),
    #                                plus 2 tail zeros so every tap's shifted view is in-bounds
    # w1_ref: (Cout, 9*Cin)    bf16  tap-major conv1 weights  [o, k*Cin + c],  k = dy*3 + dx
    # b1_ref: (Cout, 1)        f32
    # w2_ref: (Cout, 9*Cout)   bf16  tap-major conv2 weights
    # b2_ref: (Cout, 1)        f32
    # o_ref : (Cout, H*Wp)     f32   flat output incl. junk pad columns (x >= W); wrapper slices
    Cout = o_ref.shape[0]
    HWp = H * Wp
    cdims = (((1,), (0,)), ((), ()))  # contract lhs dim 1 with rhs dim 0 -> (Cout, HWp)

    def conv3x3(img, w_ref, C):
        # img: (C, HWp + 2*Wp + 2) bf16 flat padded image;  w_ref: (Cout, 9*C) bf16.
        acc = None
        for k in range(9):                      # static unroll; lane shifts hit the idle XLU
            dy, dx = divmod(k, 3)
            patch = img[:, dy * Wp + dx: dy * Wp + dx + HWp]           # (C, HWp)
            part = jax.lax.dot_general(w_ref[:, k * C:(k + 1) * C], patch, cdims,
                                       preferred_element_type=jnp.float32)
            acc = part if acc is None else acc + part
        return acc                                                      # (Cout, HWp) f32

    xv = x_ref[...]                                                     # single VMEM load
    acc1 = conv3x3(xv, w1_ref, xv.shape[0])

    # flat position p <-> (y, x) = (p // Wp, p % Wp); columns x >= W carry wrapped taps (junk).
    col = jax.lax.broadcasted_iota(jnp.int32, (1, HWp), 1) % Wp
    valid = col < W                                                     # (1, HWp)

    h = jnp.maximum(acc1 + b1_ref[...], 0.0)                            # f32 bias + ReLU
    h = jnp.where(valid, h, 0.0).astype(jnp.bfloat16)                   # junk cols == conv2 pad cols

    # pad=1 border for conv2 without a VMEM scratch: [Wp+1 zeros | h | Wp+1 zeros] on lanes.
    zpad = jnp.zeros((Cout, Wp + 1), jnp.bfloat16)
    hpad = jnp.concatenate([zpad, h, zpad], axis=1)                     # (Cout, HWp + 2*Wp + 2)

    acc2 = conv3x3(hpad, w2_ref, Cout)
    out = jnp.maximum(acc2 + b2_ref[...], 0.0)                          # f32 bias + ReLU
    o_ref[...] = jnp.where(valid, out, 0.0)                             # dense (Cout, HWp) store


def twotimes_conv_pallas(x_nchw, w1_hwio, b1, w2_hwio, b2):
    N, Cin, H, W = x_nchw.shape
    Cout = w1_hwio.shape[-1]
    Hp, Wp = H + 2, W + 2
    HWp = H * Wp

    # Layout plumbing only (free reshapes, no transposes): NCHW is already channel-major.
    x_pad = jnp.pad(x_nchw.astype(jnp.float32), ((0, 0), (0, 0), (1, 1), (1, 1)))
    x_flat = jnp.pad(x_pad.reshape(N, Cin, Hp * Wp), ((0, 0), (0, 0), (0, 2)))
    x_flat = x_flat.astype(jnp.bfloat16)                                # (N, Cin, Hp*Wp + 2)

    # Tap-major weight matrices: [o, k*C + c] with k = dy*3 + dx (ready for a K=9*C GEMM too).
    w1m = w1_hwio.reshape(9 * Cin, Cout).T.astype(jnp.bfloat16)         # (Cout, 9*Cin)
    w2m = w2_hwio.reshape(9 * Cout, Cout).T.astype(jnp.bfloat16)        # (Cout, 9*Cout)
    b1c = b1.reshape(Cout, 1).astype(jnp.float32)
    b2c = b2.reshape(Cout, 1).astype(jnp.float32)

    flops = 2 * N * H * W * 9 * (Cin * Cout + Cout * Cout)
    bytes_accessed = ((x_flat.size + w1m.size + w2m.size) * 2
                      + (b1c.size + b2c.size) * 4 + N * Cout * HWp * 4)

    # At 16x16x8 one whole image is the right block. When scaling H/W/C (especially for v7x's
    # 64 MiB VMEM), switch to H-row tiles with a 1-row halo and set vmem_limit_bytes.
    out_flat = pl.pallas_call(
        functools.partial(_doubleconv_kernel, H=H, W=W, Wp=Wp),
        out_shape=jax.ShapeDtypeStruct((N, Cout, HWp), jnp.float32),
        grid=(N,),  # >= 2 "parallel" steps so both v7x TensorCores get work
        in_specs=[
            pl.BlockSpec((None, Cin, Hp * Wp + 2), lambda n: (n, 0, 0)),
            pl.BlockSpec((Cout, 9 * Cin), lambda n: (0, 0)),
            pl.BlockSpec((Cout, 1), lambda n: (0, 0)),
            pl.BlockSpec((Cout, 9 * Cout), lambda n: (0, 0)),
            pl.BlockSpec((Cout, 1), lambda n: (0, 0)),
        ],
        out_specs=pl.BlockSpec((None, Cout, HWp), lambda n: (n, 0, 0)),
        compiler_params=pltpu.CompilerParams(dimension_semantics=("parallel",)),
        cost_estimate=pl.CostEstimate(flops=flops, transcendentals=0,
                                      bytes_accessed=bytes_accessed),
    )(x_flat, w1m, b1c, w2m, b2c)

    # (N, Cout, H*Wp) -> (N, Cout, H, Wp) -> drop the 2 junk columns per row: already NCHW.
    return out_flat.reshape(N, Cout, H, Wp)[:, :, :, :W]


def _reference(x_nchw, w1_hwio, b1, w2_hwio, b2):
    dn = ("NHWC", "HWIO", "NHWC")
    x = jnp.transpose(x_nchw, (0, 2, 3, 1))
    h = jax.lax.conv_general_dilated(x, w1_hwio, (1, 1), "SAME", dimension_numbers=dn) + b1
    h = jnp.maximum(h, 0.0)
    o = jax.lax.conv_general_dilated(h, w2_hwio, (1, 1), "SAME", dimension_numbers=dn) + b2
    o = jnp.maximum(o, 0.0)
    return jnp.transpose(o, (0, 3, 1, 2))


if __name__ == "__main__":
    # shapes: batch=2, inch=4, outch=8, spatial=16x16
    N, Cin, Cout, H, W = 2, 4, 8, 16, 16

    key = jax.random.PRNGKey(0)
    kx, kw1, kb1, kw2, kb2 = jax.random.split(key, 5)
    x = jax.random.normal(kx, (N, Cin, H, W), jnp.float32)
    # deterministic parameter init (Kaiming-ish scale)
    w1 = jax.random.normal(kw1, (3, 3, Cin, Cout), jnp.float32) * (1.0 / np.sqrt(9 * Cin))
    b1 = jax.random.normal(kb1, (Cout,), jnp.float32) * 0.01
    w2 = jax.random.normal(kw2, (3, 3, Cout, Cout), jnp.float32) * (1.0 / np.sqrt(9 * Cout))
    b2 = jax.random.normal(kb2, (Cout,), jnp.float32) * 0.01

    out = twotimes_conv_pallas(x, w1, b1, w2, b2)
    jax.block_until_ready(out)

    ref = _reference(x, w1, b1, w2, b2)
    # bf16 MXU operands (f32 accumulation) -> tolerance loosened per review guidance.
    np.testing.assert_allclose(np.asarray(out), np.asarray(ref), rtol=2e-2, atol=2e-2)

    print("KERNEL_OK")
</pallas_src>

<mosaic_0001>
module attributes {stable_mosaic.version = 11 : i64} {
  func.func @_doubleconv_kernel(%arg0: i32, %arg1: memref<1x4x326xbf16, #tpu.memory_space<vmem>>, %arg2: memref<8x36xbf16, #tpu.memory_space<vmem>>, %arg3: memref<8x1xf32, #tpu.memory_space<vmem>>, %arg4: memref<8x72xbf16, #tpu.memory_space<vmem>>, %arg5: memref<8x1xf32, #tpu.memory_space<vmem>>, %arg6: memref<1x8x288xf32, #tpu.memory_space<vmem>>) attributes {dimension_semantics = [#tpu.dimension_semantics<parallel>], iteration_bounds = array<i64: 2>, scalar_prefetch = 0 : i64, scratch_operands = 0 : i64, tpu.core_type = #tpu.core_type<tc>, window_params = [{transform_indices = @transform_0, window_bounds = array<i64: 1, 4, 326>}, {pipeline_mode = #tpu.pipeline_mode<synchronous>, transform_indices = @transform_1, window_bounds = array<i64: 8, 36>}, {pipeline_mode = #tpu.pipeline_mode<synchronous>, transform_indices = @transform_2, window_bounds = array<i64: 8, 1>}, {pipeline_mode = #tpu.pipeline_mode<synchronous>, transform_indices = @transform_3, window_bounds = array<i64: 8, 72>}, {pipeline_mode = #tpu.pipeline_mode<synchronous>, transform_indices = @transform_4, window_bounds = array<i64: 8, 1>}, {transform_indices = @transform_5, window_bounds = array<i64: 1, 8, 288>}]} {
    %c0 = arith.constant 0 : index
    %c0_0 = arith.constant 0 : index
    %c0_1 = arith.constant 0 : index
    %0 = vector.load %arg1[%c0, %c0_0, %c0_1] : memref<1x4x326xbf16, #tpu.memory_space<vmem>>, vector<1x4x326xbf16>
    %1 = vector.shape_cast %0 : vector<1x4x326xbf16> to vector<4x326xbf16>
    %2 = vector.extract_strided_slice %1 {offsets = [0, 0], sizes = [4, 288], strides = [1, 1]} : vector<4x326xbf16> to vector<4x288xbf16>
    %c0_2 = arith.constant 0 : index
    %c0_3 = arith.constant 0 : index
    %3 = vector.load %arg2[%c0_2, %c0_3] : memref<8x36xbf16, #tpu.memory_space<vmem>>, vector<8x4xbf16>
    %cst = arith.constant dense<0.000000e+00> : vector<8x288xf32>
    %4 = tpu.matmul %3, %2, %cst {dimension_numbers = #tpu.dot_dimension_numbers<[1], [0], [0], [1], [0, 0, 1, 1], [], []>} : vector<8x4xbf16>, vector<4x288xbf16>, vector<8x288xf32> -> vector<8x288xf32>
    %5 = vector.extract_strided_slice %1 {offsets = [0, 1], sizes = [4, 288], strides = [1, 1]} : vector<4x326xbf16> to vector<4x288xbf16>
    %c0_4 = arith.constant 0 : index
    %c4 = arith.constant 4 : index
    %6 = vector.load %arg2[%c0_4, %c4] : memref<8x36xbf16, #tpu.memory_space<vmem>>, vector<8x4xbf16>
    %cst_5 = arith.constant dense<0.000000e+00> : vector<8x288xf32>
    %7 = tpu.matmul %6, %5, %cst_5 {dimension_numbers = #tpu.dot_dimension_numbers<[1], [0], [0], [1], [0, 0, 1, 1], [], []>} : vector<8x4xbf16>, vector<4x288xbf16>, vector<8x288xf32> -> vector<8x288xf32>
    %8 = arith.addf %4, %7 : vector<8x288xf32>
    %9 = vector.extract_strided_slice %1 {offsets = [0, 2], sizes = [4, 288], strides = [1, 1]} : vector<4x326xbf16> to vector<4x288xbf16>
    %c0_6 = arith.constant 0 : index
    %c8 = arith.constant 8 : index
    %10 = vector.load %arg2[%c0_6, %c8] : memref<8x36xbf16, #tpu.memory_space<vmem>>, vector<8x4xbf16>
    %cst_7 = arith.constant dense<0.000000e+00> : vector<8x288xf32>
    %11 = tpu.matmul %10, %9, %cst_7 {dimension_numbers = #tpu.dot_dimension_numbers<[1], [0], [0], [1], [0, 0, 1, 1], [], []>} : vector<8x4xbf16>, vector<4x288xbf16>, vector<8x288xf32> -> vector<8x288xf32>
    %12 = arith.addf %8, %11 : vector<8x288xf32>
    %13 = vector.extract_strided_slice %1 {offsets = [0, 18], sizes = [4, 288], strides = [1, 1]} : vector<4x326xbf16> to vector<4x288xbf16>
    %c0_8 = arith.constant 0 : index
    %c12 = arith.constant 12 : index
    %14 = vector.load %arg2[%c0_8, %c12] : memref<8x36xbf16, #tpu.memory_space<vmem>>, vector<8x4xbf16>
    %cst_9 = arith.constant dense<0.000000e+00> : vector<8x288xf32>
    %15 = tpu.matmul %14, %13, %cst_9 {dimension_numbers = #tpu.dot_dimension_numbers<[1], [0], [0], [1], [0, 0, 1, 1], [], []>} : vector<8x4xbf16>, vector<4x288xbf16>, vector<8x288xf32> -> vector<8x288xf32>
    %16 = arith.addf %12, %15 : vector<8x288xf32>
    %17 = vector.extract_strided_slice %1 {offsets = [0, 19], sizes = [4, 288], strides = [1, 1]} : vector<4x326xbf16> to vector<4x288xbf16>
    %c0_10 = arith.constant 0 : index
    %c16 = arith.constant 16 : index
    %18 = vector.load %arg2[%c0_10, %c16] : memref<8x36xbf16, #tpu.memory_space<vmem>>, vector<8x4xbf16>
    %cst_11 = arith.constant dense<0.000000e+00> : vector<8x288xf32>
    %19 = tpu.matmul %18, %17, %cst_11 {dimension_numbers = #tpu.dot_dimension_numbers<[1], [0], [0], [1], [0, 0, 1, 1], [], []>} : vector<8x4xbf16>, vector<4x288xbf16>, vector<8x288xf32> -> vector<8x288xf32>
    %20 = arith.addf %16, %19 : vector<8x288xf32>
    %21 = vector.extract_strided_slice %1 {offsets = [0, 20], sizes = [4, 288], strides = [1, 1]} : vector<4x326xbf16> to vector<4x288xbf16>
    %c0_12 = arith.constant 0 : index
    %c20 = arith.constant 20 : index
    %22 = vector.load %arg2[%c0_12, %c20] : memref<8x36xbf16, #tpu.memory_space<vmem>>, vector<8x4xbf16>
    %cst_13 = arith.constant dense<0.000000e+00> : vector<8x288xf32>
    %23 = tpu.matmul %22, %21, %cst_13 {dimension_numbers = #tpu.dot_dimension_numbers<[1], [0], [0], [1], [0, 0, 1, 1], [], []>} : vector<8x4xbf16>, vector<4x288xbf16>, vector<8x288xf32> -> vector<8x288xf32>
    %24 = arith.addf %20, %23 : vector<8x288xf32>
    %25 = vector.extract_strided_slice %1 {offsets = [0, 36], sizes = [4, 288], strides = [1, 1]} : vector<4x326xbf16> to vector<4x288xbf16>
    %c0_14 = arith.constant 0 : index
    %c24 = arith.constant 24 : index
    %26 = vector.load %arg2[%c0_14, %c24] : memref<8x36xbf16, #tpu.memory_space<vmem>>, vector<8x4xbf16>
    %cst_15 = arith.constant dense<0.000000e+00> : vector<8x288xf32>
    %27 = tpu.matmul %26, %25, %cst_15 {dimension_numbers = #tpu.dot_dimension_numbers<[1], [0], [0], [1], [0, 0, 1, 1], [], []>} : vector<8x4xbf16>, vector<4x288xbf16>, vector<8x288xf32> -> vector<8x288xf32>
    %28 = arith.addf %24, %27 : vector<8x288xf32>
    %29 = vector.extract_strided_slice %1 {offsets = [0, 37], sizes = [4, 288], strides = [1, 1]} : vector<4x326xbf16> to vector<4x288xbf16>
    %c0_16 = arith.constant 0 : index
    %c28 = arith.constant 28 : index
    %30 = vector.load %arg2[%c0_16, %c28] : memref<8x36xbf16, #tpu.memory_space<vmem>>, vector<8x4xbf16>
    %cst_17 = arith.constant dense<0.000000e+00> : vector<8x288xf32>
    %31 = tpu.matmul %30, %29, %cst_17 {dimension_numbers = #tpu.dot_dimension_numbers<[1], [0], [0], [1], [0, 0, 1, 1], [], []>} : vector<8x4xbf16>, vector<4x288xbf16>, vector<8x288xf32> -> vector<8x288xf32>
    %32 = arith.addf %28, %31 : vector<8x288xf32>
    %33 = vector.extract_strided_slice %1 {offsets = [0, 38], sizes = [4, 288], strides = [1, 1]} : vector<4x326xbf16> to vector<4x288xbf16>
    %c0_18 = arith.constant 0 : index
    %c32 = arith.constant 32 : index
    %34 = vector.load %arg2[%c0_18, %c32] : memref<8x36xbf16, #tpu.memory_space<vmem>>, vector<8x4xbf16>
    %cst_19 = arith.constant dense<0.000000e+00> : vector<8x288xf32>
    %35 = tpu.matmul %34, %33, %cst_19 {dimension_numbers = #tpu.dot_dimension_numbers<[1], [0], [0], [1], [0, 0, 1, 1], [], []>} : vector<8x4xbf16>, vector<4x288xbf16>, vector<8x288xf32> -> vector<8x288xf32>
    %36 = arith.addf %32, %35 : vector<8x288xf32>
    %37 = tpu.iota {dimensions = array<i32: 1>} : vector<1x288xi32>
    %c18_i32 = arith.constant 18 : i32
    %c0_i32 = arith.constant 0 : i32
    %38 = arith.cmpi eq, %c18_i32, %c0_i32 : i32
    %c1_i32 = arith.constant 1 : i32
    %39 = arith.select %38, %c1_i32, %c18_i32 : i32
    %40 = vector.broadcast %39 : i32 to vector<1x288xi32>
    %41 = arith.remsi %37, %40 : vector<1x288xi32>
    %c0_i32_20 = arith.constant 0 : i32
    %42 = vector.broadcast %c0_i32_20 : i32 to vector<1x288xi32>
    %43 = arith.cmpi ne, %41, %42 : vector<1x288xi32>
    %c0_i32_21 = arith.constant 0 : i32
    %44 = vector.broadcast %c0_i32_21 : i32 to vector<1x288xi32>
    %45 = arith.cmpi slt, %41, %44 : vector<1x288xi32>
    %c0_i32_22 = arith.constant 0 : i32
    %46 = arith.cmpi slt, %39, %c0_i32_22 : i32
    %47 = vector.broadcast %46 : i1 to vector<1x288xi1>
    %48 = vector.broadcast %47 : vector<1x288xi1> to vector<1x288xi1>
    %49 = arith.xori %45, %48 : vector<1x288xi1>
    %50 = arith.andi %49, %43 : vector<1x288xi1>
    %51 = vector.broadcast %39 : i32 to vector<1x288xi32>
    %52 = arith.addi %41, %51 : vector<1x288xi32>
    %53 = arith.select %50, %52, %41 : vector<1x288xi1>, vector<1x288xi32>
    %c16_i32 = arith.constant 16 : i32
    %54 = vector.broadcast %c16_i32 : i32 to vector<1x288xi32>
    %55 = arith.cmpi slt, %53, %54 : vector<1x288xi32>
    %c0_23 = arith.constant 0 : index
    %c0_24 = arith.constant 0 : index
    %56 = vector.load %arg3[%c0_23, %c0_24] : memref<8x1xf32, #tpu.memory_space<vmem>>, vector<8x1xf32>
    %57 = vector.broadcast %56 : vector<8x1xf32> to vector<8x288xf32>
    %58 = arith.addf %36, %57 : vector<8x288xf32>
    %cst_25 = arith.constant 0.000000e+00 : f32
    %59 = vector.broadcast %cst_25 : f32 to vector<8x288xf32>
    %60 = arith.maximumf %58, %59 : vector<8x288xf32>
    %cst_26 = arith.constant 0.000000e+00 : f32
    %61 = vector.shape_cast %55 : vector<1x288xi1> to vector<1x288xi1>
    %62 = vector.broadcast %61 : vector<1x288xi1> to vector<8x288xi1>
    %63 = vector.broadcast %cst_26 : f32 to vector<8x288xf32>
    %64 = arith.select %62, %60, %63 : vector<8x288xi1>, vector<8x288xf32>
    %65 = arith.truncf %64 : vector<8x288xf32> to vector<8x288xbf16>
    %cst_27 = arith.constant 0.000000e+00 : bf16
    %66 = vector.broadcast %cst_27 : bf16 to vector<8x19xbf16>
    %67 = tpu.concatenate %66, %65, %66 in 1 : vector<8x19xbf16>, vector<8x288xbf16>, vector<8x19xbf16> -> vector<8x326xbf16>
    %68 = vector.extract_strided_slice %67 {offsets = [0, 0], sizes = [8, 288], strides = [1, 1]} : vector<8x326xbf16> to vector<8x288xbf16>
    %c0_28 = arith.constant 0 : index
    %c0_29 = arith.constant 0 : index
    %69 = vector.load %arg4[%c0_28, %c0_29] : memref<8x72xbf16, #tpu.memory_space<vmem>>, vector<8x8xbf16>
    %cst_30 = arith.constant dense<0.000000e+00> : vector<8x288xf32>
    %70 = tpu.matmul %69, %68, %cst_30 {dimension_numbers = #tpu.dot_dimension_numbers<[1], [0], [0], [1], [0, 0, 1, 1], [], []>} : vector<8x8xbf16>, vector<8x288xbf16>, vector<8x288xf32> -> vector<8x288xf32>
    %71 = vector.extract_strided_slice %67 {offsets = [0, 1], sizes = [8, 288], strides = [1, 1]} : vector<8x326xbf16> to vector<8x288xbf16>
    %c0_31 = arith.constant 0 : index
    %c8_32 = arith.constant 8 : index
    %72 = vector.load %arg4[%c0_31, %c8_32] : memref<8x72xbf16, #tpu.memory_space<vmem>>, vector<8x8xbf16>
    %cst_33 = arith.constant dense<0.000000e+00> : vector<8x288xf32>
    %73 = tpu.matmul %72, %71, %cst_33 {dimension_numbers = #tpu.dot_dimension_numbers<[1], [0], [0], [1], [0, 0, 1, 1], [], []>} : vector<8x8xbf16>, vector<8x288xbf16>, vector<8x288xf32> -> vector<8x288xf32>
    %74 = arith.addf %70, %73 : vector<8x288xf32>
    %75 = vector.extract_strided_slice %67 {offsets = [0, 2], sizes = [8, 288], strides = [1, 1]} : vector<8x326xbf16> to vector<8x288xbf16>
    %c0_34 = arith.constant 0 : index
    %c16_35 = arith.constant 16 : index
    %76 = vector.load %arg4[%c0_34, %c16_35] : memref<8x72xbf16, #tpu.memory_space<vmem>>, vector<8x8xbf16>
    %cst_36 = arith.constant dense<0.000000e+00> : vector<8x288xf32>
    %77 = tpu.matmul %76, %75, %cst_36 {dimension_numbers = #tpu.dot_dimension_numbers<[1], [0], [0], [1], [0, 0, 1, 1], [], []>} : vector<8x8xbf16>, vector<8x288xbf16>, vector<8x288xf32> -> vector<8x288xf32>
    %78 = arith.addf %74, %77 : vector<8x288xf32>
    %79 = vector.extract_strided_slice %67 {offsets = [0, 18], sizes = [8, 288], strides = [1, 1]} : vector<8x326xbf16> to vector<8x288xbf16>
    %c0_37 = arith.constant 0 : index
    %c24_38 = arith.constant 24 : index
    %80 = vector.load %arg4[%c0_37, %c24_38] : memref<8x72xbf16, #tpu.memory_space<vmem>>, vector<8x8xbf16>
    %cst_39 = arith.constant dense<0.000000e+00> : vector<8x288xf32>
    %81 = tpu.matmul %80, %79, %cst_39 {dimension_numbers = #tpu.dot_dimension_numbers<[1], [0], [0], [1], [0, 0, 1, 1], [], []>} : vector<8x8xbf16>, vector<8x288xbf16>, vector<8x288xf32> -> vector<8x288xf32>
    %82 = arith.addf %78, %81 : vector<8x288xf32>
    %83 = vector.extract_strided_slice %67 {offsets = [0, 19], sizes = [8, 288], strides = [1, 1]} : vector<8x326xbf16> to vector<8x288xbf16>
    %c0_40 = arith.constant 0 : index
    %c32_41 = arith.constant 32 : index
    %84 = vector.load %arg4[%c0_40, %c32_41] : memref<8x72xbf16, #tpu.memory_space<vmem>>, vector<8x8xbf16>
    %cst_42 = arith.constant dense<0.000000e+00> : vector<8x288xf32>
    %85 = tpu.matmul %84, %83, %cst_42 {dimension_numbers = #tpu.dot_dimension_numbers<[1], [0], [0], [1], [0, 0, 1, 1], [], []>} : vector<8x8xbf16>, vector<8x288xbf16>, vector<8x288xf32> -> vector<8x288xf32>
    %86 = arith.addf %82, %85 : vector<8x288xf32>
    %87 = vector.extract_strided_slice %67 {offsets = [0, 20], sizes = [8, 288], strides = [1, 1]} : vector<8x326xbf16> to vector<8x288xbf16>
    %c0_43 = arith.constant 0 : index
    %c40 = arith.constant 40 : index
    %88 = vector.load %arg4[%c0_43, %c40] : memref<8x72xbf16, #tpu.memory_space<vmem>>, vector<8x8xbf16>
    %cst_44 = arith.constant dense<0.000000e+00> : vector<8x288xf32>
    %89 = tpu.matmul %88, %87, %cst_44 {dimension_numbers = #tpu.dot_dimension_numbers<[1], [0], [0], [1], [0, 0, 1, 1], [], []>} : vector<8x8xbf16>, vector<8x288xbf16>, vector<8x288xf32> -> vector<8x288xf32>
    %90 = arith.addf %86, %89 : vector<8x288xf32>
    %91 = vector.extract_strided_slice %67 {offsets = [0, 36], sizes = [8, 288], strides = [1, 1]} : vector<8x326xbf16> to vector<8x288xbf16>
    %c0_45 = arith.constant 0 : index
    %c48 = arith.constant 48 : index
    %92 = vector.load %arg4[%c0_45, %c48] : memref<8x72xbf16, #tpu.memory_space<vmem>>, vector<8x8xbf16>
    %cst_46 = arith.constant dense<0.000000e+00> : vector<8x288xf32>
    %93 = tpu.matmul %92, %91, %cst_46 {dimension_numbers = #tpu.dot_dimension_numbers<[1], [0], [0], [1], [0, 0, 1, 1], [], []>} : vector<8x8xbf16>, vector<8x288xbf16>, vector<8x288xf32> -> vector<8x288xf32>
    %94 = arith.addf %90, %93 : vector<8x288xf32>
    %95 = vector.extract_strided_slice %67 {offsets = [0, 37], sizes = [8, 288], strides = [1, 1]} : vector<8x326xbf16> to vector<8x288xbf16>
    %c0_47 = arith.constant 0 : index
    %c56 = arith.constant 56 : index
    %96 = vector.load %arg4[%c0_47, %c56] : memref<8x72xbf16, #tpu.memory_space<vmem>>, vector<8x8xbf16>
    %cst_48 = arith.constant dense<0.000000e+00> : vector<8x288xf32>
    %97 = tpu.matmul %96, %95, %cst_48 {dimension_numbers = #tpu.dot_dimension_numbers<[1], [0], [0], [1], [0, 0, 1, 1], [], []>} : vector<8x8xbf16>, vector<8x288xbf16>, vector<8x288xf32> -> vector<8x288xf32>
    %98 = arith.addf %94, %97 : vector<8x288xf32>
    %99 = vector.extract_strided_slice %67 {offsets = [0, 38], sizes = [8, 288], strides = [1, 1]} : vector<8x326xbf16> to vector<8x288xbf16>
    %c0_49 = arith.constant 0 : index
    %c64 = arith.constant 64 : index
    %100 = vector.load %arg4[%c0_49, %c64] : memref<8x72xbf16, #tpu.memory_space<vmem>>, vector<8x8xbf16>
    %cst_50 = arith.constant dense<0.000000e+00> : vector<8x288xf32>
    %101 = tpu.matmul %100, %99, %cst_50 {dimension_numbers = #tpu.dot_dimension_numbers<[1], [0], [0], [1], [0, 0, 1, 1], [], []>} : vector<8x8xbf16>, vector<8x288xbf16>, vector<8x288xf32> -> vector<8x288xf32>
    %102 = arith.addf %98, %101 : vector<8x288xf32>
    %c0_51 = arith.constant 0 : index
    %c0_52 = arith.constant 0 : index
    %103 = vector.load %arg5[%c0_51, %c0_52] : memref<8x1xf32, #tpu.memory_space<vmem>>, vector<8x1xf32>
    %104 = vector.broadcast %103 : vector<8x1xf32> to vector<8x288xf32>
    %105 = arith.addf %102, %104 : vector<8x288xf32>
    %cst_53 = arith.constant 0.000000e+00 : f32
    %106 = vector.broadcast %cst_53 : f32 to vector<8x288xf32>
    %107 = arith.maximumf %105, %106 : vector<8x288xf32>
    %cst_54 = arith.constant 0.000000e+00 : f32
    %108 = vector.shape_cast %55 : vector<1x288xi1> to vector<1x288xi1>
    %109 = vector.broadcast %108 : vector<1x288xi1> to vector<8x288xi1>
    %110 = vector.broadcast %cst_54 : f32 to vector<8x288xf32>
    %111 = arith.select %109, %107, %110 : vector<8x288xi1>, vector<8x288xf32>
    %c0_55 = arith.constant 0 : index
    %c0_56 = arith.constant 0 : index
    %c0_57 = arith.constant 0 : index
    %112 = vector.load %arg6[%c0_55, %c0_56, %c0_57] : memref<1x8x288xf32, #tpu.memory_space<vmem>>, vector<1x8x288xf32>
    %113 = vector.shape_cast %112 : vector<1x8x288xf32> to vector<8x288xf32>
    %114 = vector.shape_cast %111 : vector<8x288xf32> to vector<1x8x288xf32>
    tpu.vector_store %arg6[%c0_55, %c0_56, %c0_57], %114 {strides = array<i32>} : memref<1x8x288xf32, #tpu.memory_space<vmem>>, vector<1x8x288xf32>,
    return
  }
  func.func @transform_0(%arg0: i32) -> (i32, i32, i32) {
    %c0_i32 = arith.constant 0 : i32
    %c0_i32_0 = arith.constant 0 : i32
    %c0_i32_1 = arith.constant 0 : i32
    return %arg0, %c0_i32, %c0_i32_0 : i32, i32, i32
  }
  func.func @transform_1(%arg0: i32) -> (i32, i32) {
    %c0_i32 = arith.constant 0 : i32
    %c0_i32_0 = arith.constant 0 : i32
    %c0_i32_1 = arith.constant 0 : i32
    return %c0_i32, %c0_i32_0 : i32, i32
  }
  func.func @transform_2(%arg0: i32) -> (i32, i32) {
    %c0_i32 = arith.constant 0 : i32
    %c0_i32_0 = arith.constant 0 : i32
    %c0_i32_1 = arith.constant 0 : i32
    return %c0_i32, %c0_i32_0 : i32, i32
  }
  func.func @transform_3(%arg0: i32) -> (i32, i32) {
    %c0_i32 = arith.constant 0 : i32
    %c0_i32_0 = arith.constant 0 : i32
    %c0_i32_1 = arith.constant 0 : i32
    return %c0_i32, %c0_i32_0 : i32, i32
  }
  func.func @transform_4(%arg0: i32) -> (i32, i32) {
    %c0_i32 = arith.constant 0 : i32
    %c0_i32_0 = arith.constant 0 : i32
    %c0_i32_1 = arith.constant 0 : i32
    return %c0_i32, %c0_i32_0 : i32, i32
  }
  func.func @transform_5(%arg0: i32) -> (i32, i32, i32) {
    %c0_i32 = arith.constant 0 : i32
    %c0_i32_0 = arith.constant 0 : i32
    %c0_i32_1 = arith.constant 0 : i32
    return %arg0, %c0_i32, %c0_i32_0 : i32, i32, i32
  }
}

</mosaic_0001>

<llo_original>
// kernel: tpu_custom_call.1
$region0: #{tpu_custom_call.1}
  #allocation0 [shape = 'u32[]', space=smem, size = 0x4, offset = 0x4, fixed_abs, tag = 'smem constant byte address 0x4 - core index']
  #allocation1 [shape = 'u32[144,128]{1,0:T(1,128)}', space=vmem, size = 0x12000, scoped, tag = 'internal scratch']
  %s0 = inlined_call_operand.vmem [shape: bf16[2,4,326], index: 0, kind: input, shape index: {}]
  %s1 = inlined_call_operand.vmem [shape: bf16[8,36], index: 1, kind: input, shape index: {}]
  %s2 = inlined_call_operand.vmem [shape: f32[8,1], index: 2, kind: input, shape index: {}]
  %s3 = inlined_call_operand.vmem [shape: bf16[8,72], index: 3, kind: input, shape index: {}]
  %s4 = inlined_call_operand.vmem [shape: f32[8,1], index: 4, kind: input, shape index: {}]
  %s5 = inlined_call_operand.hbm [shape: f32[2,8,288], index: 5, kind: output, shape index: {}]
  %s6 = sld [smem:[#allocation0]]
  $region53: #{tpu_custom_call.1} parent=0
    _
  %s8 = ssub.s32 1, %s6
  %s9 = scalar_select 0, %s8, %s6
  $region1: #{tpu_custom_call.1} parent=0
    #allocation2 [shape = 'u8[24576]{0}', space=vmem, size = 0x6000, scoped, tag = 'output window, operand 0']
    #allocation3 [shape = 's32[2]{0}', space=sflag, size = 0x8, scoped, tag = 'scoped memory for tpu_custom_call.1']
    %10 = vsyncpa [#allocation3], 0
    %s11 = scalar_lea.sflag [#allocation3], 1
    %12 = vsyncpa %s11, 0
    loop: start=0, step=1, limit=4
    $region2: #{tpu_custom_call.1} parent=1 // loop_pre_header
      _
    $region3: #{tpu_custom_call.1} parent=1 // loop_header
      %s14 = sphi 0, %s18
      %p15 = scmp.ge.s32.totalorder %s14, 4
      %s24 = sphi 0, %s26
      %s27 = sphi 0, %s24
      %s28 = sphi 0, %s27
      %s44 = sphi 0, %s28
      %s48 = sphi 0, %s48
      %s50 = sphi 0, %s48
      %s51 = sphi 0, %s50
      %s65 = sphi 0, %s51
      %s69 = sphi 0, %s69
      %s71 = sphi 0, %s69
      %s72 = sphi 0, %s71
      %s86 = sphi 0, %s72
      %s90 = sphi 0, %s90
      %s92 = sphi 0, %s90
      %s93 = sphi 0, %s92
      %s107 = sphi 0, %s93
      %s111 = sphi 0, %s111
      %s113 = sphi 0, %s111
      %s114 = sphi 0, %s113
      %s128 = sphi 0, %s114
      %s134 = sphi 0, %s136
      %s137 = sphi 0, %s134
      %s138 = sphi 0, %s137
      %s154 = sphi 0, %s138
    $region4: #{tpu_custom_call.1} parent=1 // loop_header_branch
      %17 = sbr.rel (%p15) target = $region8
    $region5: #{tpu_custom_call.1} parent=1 // loop_body
      %s19 = ssub.s32 %s14, 1
      %s20 = ssub.s32 %s14, 2
      %s21 = sadd.s32 %s14, 1
      %s22 = ssub.s32 %s14, %s21
      %p23 = scmp.eq.s32.totalorder %s22, 0
      %s25 = sadd.s32 %s24, 1
      %s26 = scalar_select %p23, %s24, %s25
      %p29 = pneg %p23
      %p30 = scmp.eq.s32.totalorder %s14, 1
      %p31 = por %p29, %p30
      %p32 = scmp.ne.s32.totalorder %s24, %s27
      %p33 = scmp.eq.s32.totalorder %s14, 0
      %p34 = por %p32, %p33
      %p35 = scmp.ne.s32.totalorder %s24, %s27
      %p36 = scmp.eq.s32.totalorder %s19, 1
      %p37 = por %p35, %p36
      %p38 = scmp.ne.s32.totalorder %s27, %s28
      %p39 = scmp.eq.s32.totalorder %s19, 0
      %p40 = por %p38, %p39
      %p41 = scmp.ne.s32.totalorder %s27, %s28
      %p42 = scmp.eq.s32.totalorder %s20, 1
      %p43 = por %p41, %p42
      %p45 = scmp.ne.s32.totalorder %s28, %s44
      %p46 = scmp.eq.s32.totalorder %s20, 0
      %p47 = por %p45, %p46
      %s49 = sadd.s32 %s48, 1
      %p52 = scmp.eq.s32.totalorder %s14, 1
      %p53 = scmp.ne.s32.totalorder %s48, %s50
      %p54 = scmp.eq.s32.totalorder %s14, 0
      %p55 = por %p53, %p54
      %p56 = scmp.ne.s32.totalorder %s48, %s50
      %p57 = scmp.eq.s32.totalorder %s19, 1
      %p58 = por %p56, %p57
      %p59 = scmp.ne.s32.totalorder %s50, %s51
      %p60 = scmp.eq.s32.totalorder %s19, 0
      %p61 = por %p59, %p60
      %p62 = scmp.ne.s32.totalorder %s50, %s51
      %p63 = scmp.eq.s32.totalorder %s20, 1
      %p64 = por %p62, %p63
      %p66 = scmp.ne.s32.totalorder %s51, %s65
      %p67 = scmp.eq.s32.totalorder %s20, 0
      %p68 = por %p66, %p67
      %s70 = sadd.s32 %s69, 1
      %p73 = scmp.eq.s32.totalorder %s14, 1
      %p74 = scmp.ne.s32.totalorder %s69, %s71
      %p75 = scmp.eq.s32.totalorder %s14, 0
      %p76 = por %p74, %p75
      %p77 = scmp.ne.s32.totalorder %s69, %s71
      %p78 = scmp.eq.s32.totalorder %s19, 1
      %p79 = por %p77, %p78
      %p80 = scmp.ne.s32.totalorder %s71, %s72
      %p81 = scmp.eq.s32.totalorder %s19, 0
      %p82 = por %p80, %p81
      %p83 = scmp.ne.s32.totalorder %s71, %s72
      %p84 = scmp.eq.s32.totalorder %s20, 1
      %p85 = por %p83, %p84
      %p87 = scmp.ne.s32.totalorder %s72, %s86
      %p88 = scmp.eq.s32.totalorder %s20, 0
      %p89 = por %p87, %p88
      %s91 = sadd.s32 %s90, 1
      %p94 = scmp.eq.s32.totalorder %s14, 1
      %p95 = scmp.ne.s32.totalorder %s90, %s92
      %p96 = scmp.eq.s32.totalorder %s14, 0
      %p97 = por %p95, %p96
      %p98 = scmp.ne.s32.totalorder %s90, %s92
      %p99 = scmp.eq.s32.totalorder %s19, 1
      %p100 = por %p98, %p99
      %p101 = scmp.ne.s32.totalorder %s92, %s93
      %p102 = scmp.eq.s32.totalorder %s19, 0
      %p103 = por %p101, %p102
      %p104 = scmp.ne.s32.totalorder %s92, %s93
      %p105 = scmp.eq.s32.totalorder %s20, 1
      %p106 = por %p104, %p105
      %p108 = scmp.ne.s32.totalorder %s93, %s107
      %p109 = scmp.eq.s32.totalorder %s20, 0
      %p110 = por %p108, %p109
      %s112 = sadd.s32 %s111, 1
      %p115 = scmp.eq.s32.totalorder %s14, 1
      %p116 = scmp.ne.s32.totalorder %s111, %s113
      %p117 = scmp.eq.s32.totalorder %s14, 0
      %p118 = por %p116, %p117
      %p119 = scmp.ne.s32.totalorder %s111, %s113
      %p120 = scmp.eq.s32.totalorder %s19, 1
      %p121 = por %p119, %p120
      %p122 = scmp.ne.s32.totalorder %s113, %s114
      %p123 = scmp.eq.s32.totalorder %s19, 0
      %p124 = por %p122, %p123
      %p125 = scmp.ne.s32.totalorder %s113, %s114
      %p126 = scmp.eq.s32.totalorder %s20, 1
      %p127 = por %p125, %p126
      %p129 = scmp.ne.s32.totalorder %s114, %s128
      %p130 = scmp.eq.s32.totalorder %s20, 0
      %p131 = por %p129, %p130
      %s132 = ssub.s32 %s14, %s21
      %p133 = scmp.eq.s32.totalorder %s132, 0
      %s135 = sadd.s32 %s134, 1
      %s136 = scalar_select %p133, %s134, %s135
      %p139 = pneg %p133
      %p140 = scmp.eq.s32.totalorder %s14, 1
      %p141 = por %p139, %p140
      %p142 = scmp.ne.s32.totalorder %s134, %s137
      %p143 = scmp.eq.s32.totalorder %s14, 0
      %p144 = por %p142, %p143
      %p145 = scmp.ne.s32.totalorder %s134, %s137
      %p146 = scmp.eq.s32.totalorder %s19, 1
      %p147 = por %p145, %p146
      %p148 = scmp.ne.s32.totalorder %s137, %s138
      %p149 = scmp.eq.s32.totalorder %s19, 0
      %p150 = por %p148, %p149
      %p151 = scmp.ne.s32.totalorder %s137, %s138
      %p152 = scmp.eq.s32.totalorder %s20, 1
      %p153 = por %p151, %p152
      %p155 = scmp.ne.s32.totalorder %s138, %s154
      %p156 = scmp.eq.s32.totalorder %s20, 0
      %p157 = por %p155, %p156
      %p158 = scmp.le.s32.totalorder 1, %s14
      %p159 = scmp.lt.s32.totalorder %s14, 3
      %p160 = pnand %p158, %p159
      %p161 = pneg %p160
      // Predicated region
      $region9: #{tpu_custom_call.1} parent=5 // pred_check
        _
      $region10: #{tpu_custom_call.1} parent=5 // pred_check_branch
        %163 = sbr.rel (%p160) target = $region12
      $region11: #{tpu_custom_call.1} parent=5 // pred_region
        %s164 = ssub.s32 %s14, 1
        // Predicated region
        $region13: #{tpu_custom_call.1} parent=11 // pred_check
          %p165 = pneg %p61
        $region14: #{tpu_custom_call.1} parent=11 // pred_check_branch
          %167 = sbr.rel (%p165) target = $region16
        $region15: #{tpu_custom_call.1} parent=11 // pred_region
          _
        $region16: #{tpu_custom_call.1} parent=11 // pred_fallthru
          _
        // Predicated region
        $region17: #{tpu_custom_call.1} parent=11 // pred_check
          %p168 = pneg %p82
        $region18: #{tpu_custom_call.1} parent=11 // pred_check_branch
          %170 = sbr.rel (%p168) target = $region20
        $region19: #{tpu_custom_call.1} parent=11 // pred_region
          _
        $region20: #{tpu_custom_call.1} parent=11 // pred_fallthru
          _
        // Predicated region
        $region21: #{tpu_custom_call.1} parent=11 // pred_check
          %p171 = pneg %p103
        $region22: #{tpu_custom_call.1} parent=11 // pred_check_branch
          %173 = sbr.rel (%p171) target = $region24
        $region23: #{tpu_custom_call.1} parent=11 // pred_region
          _
        $region24: #{tpu_custom_call.1} parent=11 // pred_fallthru
          _
        // Predicated region
        $region25: #{tpu_custom_call.1} parent=11 // pred_check
          %p174 = pneg %p124
        $region26: #{tpu_custom_call.1} parent=11 // pred_check_branch
          %176 = sbr.rel (%p174) target = $region28
        $region27: #{tpu_custom_call.1} parent=11 // pred_region
          _
        $region28: #{tpu_custom_call.1} parent=11 // pred_fallthru
          _
      $region12: #{tpu_custom_call.1} parent=5 // pred_fallthru
        _
      %p177 = scmp.lt.s32.totalorder %s14, 2
      // Predicated region
      $region29: #{tpu_custom_call.1} parent=5 // pred_check
        %p178 = pneg %p177
      $region30: #{tpu_custom_call.1} parent=5 // pred_check_branch
        %180 = sbr.rel (%p178) target = $region32
      $region31: #{tpu_custom_call.1} parent=5 // pred_region
        // Predicated region
        $region33: #{tpu_custom_call.1} parent=31 // pred_check
          %p181 = pneg %p34
        $region34: #{tpu_custom_call.1} parent=31 // pred_check_branch
          %183 = sbr.rel (%p181) target = $region36
        $region35: #{tpu_custom_call.1} parent=31 // pred_region
          %p184 = scmp.lt.s32.totalorder %s14, 1
          %s185 = scalar_select %p184, %s14, 1
          %s186 = smul.addr %s185, 3
          %s187 = smul.addr %s186, 2
          %s188 = scalar_lea.vmem %s0, %s187
        $region36: #{tpu_custom_call.1} parent=31 // pred_fallthru
          _
      $region32: #{tpu_custom_call.1} parent=5 // pred_fallthru
        _
      %p189 = scmp.le.s32.totalorder 1, %s14
      %p190 = scmp.lt.s32.totalorder %s14, 3
      %p191 = pnand %p189, %p190
      %p192 = pneg %p191
      // Predicated region
      $region37: #{tpu_custom_call.1} parent=5 // pred_check
        _
      $region38: #{tpu_custom_call.1} parent=5 // pred_check_branch
        %194 = sbr.rel (%p191) target = $region40
      $region39: #{tpu_custom_call.1} parent=5 // pred_region
        %s195 = ssub.s32 %s14, 1
        %p196 = scmp.lt.s32.totalorder %s19, 1
        %s197 = scalar_select %p196, %s19, 1
        %s198 = smul.addr %s197, 3
        %s199 = smul.addr %s198, 2
        %s200 = scalar_lea.vmem %s0, %s199
        %p201 = pneg %p40
        %p202 = pneg %p37
        %p203 = pneg %p61
        %p204 = pneg %p58
        %p205 = pneg %p82
        %p206 = pneg %p79
        %p207 = pneg %p103
        %p208 = pneg %p100
        %p209 = pneg %p124
        %p210 = pneg %p121
        %p211 = pneg %p150
        %p212 = pneg %p147
        %s213 = sand.u32 %s137, 1
        %s214 = scalar_lea.sflag [#allocation3], %s213
        %s215 = sand.u32 %s137, 1
        %s216 = smul.addr %s215, 24
        %s217 = scalar_lea.vmem [#allocation2], %s216
        %p218 = scmp.lt.s32.totalorder %s19, 1
        %s219 = scalar_select %p218, %s19, 1
        %s220 = smul.addr %s219, 3
        %s221 = smul.addr %s220, 2
        %s222 = scalar_lea.vmem %s0, %s221
        %v224 = vld [vmem:[%s222] sm:$0x3f]
        %v225 = vld [vmem:[%s1] sm:$0xf]
        %v227 = vunpack.c.l.b16 %v225
        %v228 = vpack.c.b16 %v227, %v227
        %229 = vrot.lane.b32.xlu0 %v228, 124
        %v230 = vpop.permute.xlu0 %229
        %v232 = vcombine.high %v224, %v224
        %v234 = vunpack.c.l.s4 1983009808
        %v235 = vunpack.c.0.s8 %v234
        %v236 = vlaneseq
        %v237 = vshrl.u32 %v236, 7
        %v238 = vsub.s32 %v235, %v237
        %v239 = vrot.slane %v224, %v238
        %v241 = vunpack.c.l.s4 1983009808
        %v242 = vunpack.c.0.s8 %v241
        %v243 = vlaneseq
        %v244 = vshrl.u32 %v243, 7
        %v245 = vsub.s32 %v242, %v244
        %v246 = vrot.slane %v232, %v245
        %v247 = vcombine.high %v239, %v239
        %248 = vrot.lane.b32.xlu0 %v239, 127
        %v249 = vpop.permute.xlu0 %248
        %250 = vrot.lane.b32.xlu0 %v247, 127
        %v251 = vpop.permute.xlu0 %250
        %252 = vrot.lane.b32.xlu0 %v246, 127
        %v253 = vpop.permute.xlu0 %252
        %vm254 = vcmask 1039360
        %v255 = vsel %vm254, %v249, %v251
        %v256 = vsel %vm254, %v251, %v253
        %vm257 = vcmask 31744
        %v259 = vsel %vm257, %v230, 0
        %vm261 = vcmask 1041408
        %v263 = vsel %vm261, %v255, 0
        %v266 = vsel %vm261, %v256, 0
        %v269 = vsel %vm261, %v253, 0
        %271 = vmatprep.subr.bf16.mxu0 %v266
        %272 = vmatpush1.bf16.msra.mxu0 %v263
        %273 = vmatprep.subr.bf16.mxu0 0
        %274 = vmatpush1.bf16.msra.mxu0 0
        %275 = vmatprep.subr.bf16.mxu0 0
        %276 = vmatpush1.bf16.msra.mxu0 0
        %277 = vmatprep.subr.bf16.mxu0 0
        %278 = vmatpush1.bf16.msra.mxu0 0
        %279 = vmatprep.subr.bf16.mxu0 0
        %280 = vmatpush1.bf16.msra.mxu0 0
        %281 = vmatprep.subr.bf16.mxu0 0
        %282 = vmatpush1.bf16.msra.mxu0 0
        %283 = vmatprep.subr.bf16.mxu0 0
        %284 = vmatpush1.bf16.msra.mxu0 0
        %285 = vmatprep.subr.bf16.mxu0 0
        %286 = vmatpush1.bf16.msra.mxu0 0
        %287 = vmatprep.subr.bf16.mxu0 0
        %288 = vmatpush1.bf16.msra.mxu0 0
        %289 = vmatprep.subr.bf16.mxu0 0
        %290 = vmatpush1.bf16.msra.mxu0 0
        %291 = vmatprep.subr.bf16.mxu0 0
        %292 = vmatpush1.bf16.msra.mxu0 0
        %293 = vmatprep.subr.bf16.mxu0 0
        %294 = vmatpush1.bf16.msra.mxu0 0
        %295 = vmatprep.subr.bf16.mxu0 0
        %296 = vmatpush1.bf16.msra.mxu0 0
        %297 = vmatprep.subr.bf16.mxu0 0
        %298 = vmatpush1.bf16.msra.mxu0 0
        %299 = vmatprep.subr.bf16.mxu0 0
        %300 = vmatpush1.bf16.msra.mxu0 0
        %301 = vmatprep.subr.bf16.mxu0 0
        %302 = vmatpush1.bf16.msra.mxu0 0
        %303 = vmatprep.mubr.bf16.mxu0 0
        %304 = vmatmul.mubr.bf16.gmra.mrb[0].mxu0 %v259
        %v305 = vpop.f32.mrb[0].mxu0
        %v306 = vadd.f32 0.0, %v305
        %v307 = vpop.f32.mrb[0].mxu0
        %v308 = vadd.f32 0.0, %v307
        %v309 = vpop.f32.mrb[0].mxu0
        %v310 = vpop.f32.mrb[0].mxu0
        %311 = vdwg.mxu0
        %312 = vmatprep.subr.bf16.mxu0 0
        %313 = vmatpush1.bf16.msra.mxu0 %v269
        %314 = vmatprep.subr.bf16.mxu0 0
        %315 = vmatpush1.bf16.msra.mxu0 0
        %316 = vmatprep.subr.bf16.mxu0 0
        %317 = vmatpush1.bf16.msra.mxu0 0
        %318 = vmatprep.subr.bf16.mxu0 0
        %319 = vmatpush1.bf16.msra.mxu0 0
        %320 = vmatprep.subr.bf16.mxu0 0
        %321 = vmatpush1.bf16.msra.mxu0 0
        %322 = vmatprep.subr.bf16.mxu0 0
        %323 = vmatpush1.bf16.msra.mxu0 0
        %324 = vmatprep.subr.bf16.mxu0 0
        %325 = vmatpush1.bf16.msra.mxu0 0
        %326 = vmatprep.subr.bf16.mxu0 0
        %327 = vmatpush1.bf16.msra.mxu0 0
        %328 = vmatprep.subr.bf16.mxu0 0
        %329 = vmatpush1.bf16.msra.mxu0 0
        %330 = vmatprep.subr.bf16.mxu0 0
        %331 = vmatpush1.bf16.msra.mxu0 0
        %332 = vmatprep.subr.bf16.mxu0 0
        %333 = vmatpush1.bf16.msra.mxu0 0
        %334 = vmatprep.subr.bf16.mxu0 0
        %335 = vmatpush1.bf16.msra.mxu0 0
        %336 = vmatprep.subr.bf16.mxu0 0
        %337 = vmatpush1.bf16.msra.mxu0 0
        %338 = vmatprep.subr.bf16.mxu0 0
        %339 = vmatpush1.bf16.msra.mxu0 0
        %340 = vmatprep.subr.bf16.mxu0 0
        %341 = vmatpush1.bf16.msra.mxu0 0
        %342 = vmatprep.subr.bf16.mxu0 0
        %343 = vmatpush1.bf16.msra.mxu0 0
        %344 = vmatprep.mubr.bf16.mxu0 0
        %345 = vmatmul.mubr.bf16.gmra.mrb[0].mxu0 %v259
        %v346 = vpop.f32.mrb[0].mxu0
        %v347 = vadd.f32 0.0, %v346
        %v348 = vpop.f32.mrb[0].mxu0
        %v349 = vpop.f32.mrb[0].mxu0
        %v350 = vpop.f32.mrb[0].mxu0
        %351 = vdwg.mxu0
        %v353 = vsel %vm257, %v225, 0
        %v356 = vsel %vm261, %v239, 0
        %v359 = vsel %vm261, %v247, 0
        %v362 = vsel %vm261, %v246, 0
        %364 = vmatprep.subr.bf16.mxu0 %v359
        %365 = vmatpush1.bf16.msra.mxu0 %v356
        %366 = vmatprep.subr.bf16.mxu0 0
        %367 = vmatpush1.bf16.msra.mxu0 0
        %368 = vmatprep.subr.bf16.mxu0 0
        %369 = vmatpush1.bf16.msra.mxu0 0
        %370 = vmatprep.subr.bf16.mxu0 0
        %371 = vmatpush1.bf16.msra.mxu0 0
        %372 = vmatprep.subr.bf16.mxu0 0
        %373 = vmatpush1.bf16.msra.mxu0 0
        %374 = vmatprep.subr.bf16.mxu0 0
        %375 = vmatpush1.bf16.msra.mxu0 0
        %376 = vmatprep.subr.bf16.mxu0 0
        %377 = vmatpush1.bf16.msra.mxu0 0
        %378 = vmatprep.subr.bf16.mxu0 0
        %379 = vmatpush1.bf16.msra.mxu0 0
        %380 = vmatprep.subr.bf16.mxu0 0
        %381 = vmatpush1.bf16.msra.mxu0 0
        %382 = vmatprep.subr.bf16.mxu0 0
        %383 = vmatpush1.bf16.msra.mxu0 0
        %384 = vmatprep.subr.bf16.mxu0 0
        %385 = vmatpush1.bf16.msra.mxu0 0
        %386 = vmatprep.subr.bf16.mxu0 0
        %387 = vmatpush1.bf16.msra.mxu0 0
        %388 = vmatprep.subr.bf16.mxu0 0
        %389 = vmatpush1.bf16.msra.mxu0 0
        %390 = vmatprep.subr.bf16.mxu0 0
        %391 = vmatpush1.bf16.msra.mxu0 0
        %392 = vmatprep.subr.bf16.mxu0 0
        %393 = vmatpush1.bf16.msra.mxu0 0
        %394 = vmatprep.subr.bf16.mxu0 0
        %395 = vmatpush1.bf16.msra.mxu0 0
        %396 = vmatprep.mubr.bf16.mxu0 0
        %397 = vmatmul.mubr.bf16.gmra.mrb[0].mxu0 %v353
        %v398 = vpop.f32.mrb[0].mxu0
        %v399 = vadd.f32 %v306, %v398
        %v400 = vpop.f32.mrb[0].mxu0
        %v401 = vadd.f32 %v308, %v400
        %v402 = vpop.f32.mrb[0].mxu0
        %v403 = vpop.f32.mrb[0].mxu0
        %404 = vdwg.mxu0
        %405 = vmatprep.subr.bf16.mxu0 0
        %406 = vmatpush1.bf16.msra.mxu0 %v362
        %407 = vmatprep.subr.bf16.mxu0 0
        %408 = vmatpush1.bf16.msra.mxu0 0
        %409 = vmatprep.subr.bf16.mxu0 0
        %410 = vmatpush1.bf16.msra.mxu0 0
        %411 = vmatprep.subr.bf16.mxu0 0
        %412 = vmatpush1.bf16.msra.mxu0 0
        %413 = vmatprep.subr.bf16.mxu0 0
        %414 = vmatpush1.bf16.msra.mxu0 0
        %415 = vmatprep.subr.bf16.mxu0 0
        %416 = vmatpush1.bf16.msra.mxu0 0
        %417 = vmatprep.subr.bf16.mxu0 0
        %418 = vmatpush1.bf16.msra.mxu0 0
        %419 = vmatprep.subr.bf16.mxu0 0
        %420 = vmatpush1.bf16.msra.mxu0 0
        %421 = vmatprep.subr.bf16.mxu0 0
        %422 = vmatpush1.bf16.msra.mxu0 0
        %423 = vmatprep.subr.bf16.mxu0 0
        %424 = vmatpush1.bf16.msra.mxu0 0
        %425 = vmatprep.subr.bf16.mxu0 0
        %426 = vmatpush1.bf16.msra.mxu0 0
        %427 = vmatprep.subr.bf16.mxu0 0
        %428 = vmatpush1.bf16.msra.mxu0 0
        %429 = vmatprep.subr.bf16.mxu0 0
        %430 = vmatpush1.bf16.msra.mxu0 0
        %431 = vmatprep.subr.bf16.mxu0 0
        %432 = vmatpush1.bf16.msra.mxu0 0
        %433 = vmatprep.subr.bf16.mxu0 0
        %434 = vmatpush1.bf16.msra.mxu0 0
        %435 = vmatprep.subr.bf16.mxu0 0
        %436 = vmatpush1.bf16.msra.mxu0 0
        %437 = vmatprep.mubr.bf16.mxu0 0
        %438 = vmatmul.mubr.bf16.gmra.mrb[0].mxu0 %v353
        %v439 = vpop.f32.mrb[0].mxu0
        %v440 = vadd.f32 %v347, %v439
        %v441 = vpop.f32.mrb[0].mxu0
        %v442 = vpop.f32.mrb[0].mxu0
        %v443 = vpop.f32.mrb[0].mxu0
        %444 = vdwg.mxu0
        %v445 = vld [vmem:[%s1] sm:$0xf]
        %v447 = vunpack.c.l.b16 %v445
        %v448 = vpack.c.b16 %v447, %v447
        %449 = vrot.lane.b32.xlu0 %v448, 120
        %v450 = vpop.permute.xlu0 %449
        %451 = vrot.lane.b32.xlu0 %v239, 126
        %v452 = vpop.permute.xlu0 %451
        %453 = vrot.lane.b32.xlu0 %v247, 126
        %v454 = vpop.permute.xlu0 %453
        %455 = vrot.lane.b32.xlu0 %v246, 126
        %v456 = vpop.permute.xlu0 %455
        %vm457 = vcmask 1031168
        %v458 = vsel %vm457, %v452, %v454
        %v459 = vsel %vm457, %v454, %v456
        %v461 = vsel %vm257, %v450, 0
        %v464 = vsel %vm261, %v458, 0
        %v467 = vsel %vm261, %v459, 0
        %v470 = vsel %vm261, %v456, 0
        %472 = vmatprep.subr.bf16.mxu0 %v467
        %473 = vmatpush1.bf16.msra.mxu0 %v464
        %474 = vmatprep.subr.bf16.mxu0 0
        %475 = vmatpush1.bf16.msra.mxu0 0
        %476 = vmatprep.subr.bf16.mxu0 0
        %477 = vmatpush1.bf16.msra.mxu0 0
        %478 = vmatprep.subr.bf16.mxu0 0
        %479 = vmatpush1.bf16.msra.mxu0 0
        %480 = vmatprep.subr.bf16.mxu0 0
        %481 = vmatpush1.bf16.msra.mxu0 0
        %482 = vmatprep.subr.bf16.mxu0 0
        %483 = vmatpush1.bf16.msra.mxu0 0
        %484 = vmatprep.subr.bf16.mxu0 0
        %485 = vmatpush1.bf16.msra.mxu0 0
        %486 = vmatprep.subr.bf16.mxu0 0
        %487 = vmatpush1.bf16.msra.mxu0 0
        %488 = vmatprep.subr.bf16.mxu0 0
        %489 = vmatpush1.bf16.msra.mxu0 0
        %490 = vmatprep.subr.bf16.mxu0 0
        %491 = vmatpush1.bf16.msra.mxu0 0
        %492 = vmatprep.subr.bf16.mxu0 0
        %493 = vmatpush1.bf16.msra.mxu0 0
        %494 = vmatprep.subr.bf16.mxu0 0
        %495 = vmatpush1.bf16.msra.mxu0 0
        %496 = vmatprep.subr.bf16.mxu0 0
        %497 = vmatpush1.bf16.msra.mxu0 0
        %498 = vmatprep.subr.bf16.mxu0 0
        %499 = vmatpush1.bf16.msra.mxu0 0
        %500 = vmatprep.subr.bf16.mxu0 0
        %501 = vmatpush1.bf16.msra.mxu0 0
        %502 = vmatprep.subr.bf16.mxu0 0
        %503 = vmatpush1.bf16.msra.mxu0 0
        %504 = vmatprep.mubr.bf16.mxu0 0
        %505 = vmatmul.mubr.bf16.gmra.mrb[0].mxu0 %v461
        %v506 = vpop.f32.mrb[0].mxu0
        %v507 = vadd.f32 0.0, %v506
        %v508 = vpop.f32.mrb[0].mxu0
        %v509 = vadd.f32 0.0, %v508
        %v510 = vpop.f32.mrb[0].mxu0
        %v511 = vpop.f32.mrb[0].mxu0
        %512 = vdwg.mxu0
        %513 = vmatprep.subr.bf16.mxu0 0
        %514 = vmatpush1.bf16.msra.mxu0 %v470
        %515 = vmatprep.subr.bf16.mxu0 0
        %516 = vmatpush1.bf16.msra.mxu0 0
        %517 = vmatprep.subr.bf16.mxu0 0
        %518 = vmatpush1.bf16.msra.mxu0 0
        %519 = vmatprep.subr.bf16.mxu0 0
        %520 = vmatpush1.bf16.msra.mxu0 0
        %521 = vmatprep.subr.bf16.mxu0 0
        %522 = vmatpush1.bf16.msra.mxu0 0
        %523 = vmatprep.subr.bf16.mxu0 0
        %524 = vmatpush1.bf16.msra.mxu0 0
        %525 = vmatprep.subr.bf16.mxu0 0
        %526 = vmatpush1.bf16.msra.mxu0 0
        %527 = vmatprep.subr.bf16.mxu0 0
        %528 = vmatpush1.bf16.msra.mxu0 0
        %529 = vmatprep.subr.bf16.mxu0 0
        %530 = vmatpush1.bf16.msra.mxu0 0
        %531 = vmatprep.subr.bf16.mxu0 0
        %532 = vmatpush1.bf16.msra.mxu0 0
        %533 = vmatprep.subr.bf16.mxu0 0
        %534 = vmatpush1.bf16.msra.mxu0 0
        %535 = vmatprep.subr.bf16.mxu0 0
        %536 = vmatpush1.bf16.msra.mxu0 0
        %537 = vmatprep.subr.bf16.mxu0 0
        %538 = vmatpush1.bf16.msra.mxu0 0
        %539 = vmatprep.subr.bf16.mxu0 0
        %540 = vmatpush1.bf16.msra.mxu0 0
        %541 = vmatprep.subr.bf16.mxu0 0
        %542 = vmatpush1.bf16.msra.mxu0 0
        %543 = vmatprep.subr.bf16.mxu0 0
        %544 = vmatpush1.bf16.msra.mxu0 0
        %545 = vmatprep.mubr.bf16.mxu0 0
        %546 = vmatmul.mubr.bf16.gmra.mrb[0].mxu0 %v461
        %v547 = vpop.f32.mrb[0].mxu0
        %v548 = vadd.f32 0.0, %v547
        %v549 = vpop.f32.mrb[0].mxu0
        %v550 = vpop.f32.mrb[0].mxu0
        %v551 = vpop.f32.mrb[0].mxu0
        %552 = vdwg.mxu0
        %v553 = vadd.f32 %v399, %v507
        %v554 = vadd.f32 %v401, %v509
        %v555 = vadd.f32 %v440, %v548
        %v556 = vld [vmem:[%s1] sm:$0xf]
        %v558 = vunpack.c.l.b16 %v556
        %v559 = vpack.c.b16 %v558, %v558
        %560 = vrot.lane.b32.xlu0 %v559, 116
        %v561 = vpop.permute.xlu0 %560
        %562 = vrot.lane.b32.xlu0 %v239, 110
        %v563 = vpop.permute.xlu0 %562
        %564 = vrot.lane.b32.xlu0 %v247, 110
        %v565 = vpop.permute.xlu0 %564
        %566 = vrot.lane.b32.xlu0 %v246, 110
        %v567 = vpop.permute.xlu0 %566
        %vm568 = vcmask 900096
        %v569 = vsel %vm568, %v563, %v565
        %v570 = vsel %vm568, %v565, %v567
        %v572 = vsel %vm257, %v561, 0
        %v575 = vsel %vm261, %v569, 0
        %v578 = vsel %vm261, %v570, 0
        %v581 = vsel %vm261, %v567, 0
        %583 = vmatprep.subr.bf16.mxu0 %v578
        %584 = vmatpush1.bf16.msra.mxu0 %v575
        %585 = vmatprep.subr.bf16.mxu0 0
        %586 = vmatpush1.bf16.msra.mxu0 0
        %587 = vmatprep.subr.bf16.mxu0 0
        %588 = vmatpush1.bf16.msra.mxu0 0
        %589 = vmatprep.subr.bf16.mxu0 0
        %590 = vmatpush1.bf16.msra.mxu0 0
        %591 = vmatprep.subr.bf16.mxu0 0
        %592 = vmatpush1.bf16.msra.mxu0 0
        %593 = vmatprep.subr.bf16.mxu0 0
        %594 = vmatpush1.bf16.msra.mxu0 0
        %595 = vmatprep.subr.bf16.mxu0 0
        %596 = vmatpush1.bf16.msra.mxu0 0
        %597 = vmatprep.subr.bf16.mxu0 0
        %598 = vmatpush1.bf16.msra.mxu0 0
        %599 = vmatprep.subr.bf16.mxu0 0
        %600 = vmatpush1.bf16.msra.mxu0 0
        %601 = vmatprep.subr.bf16.mxu0 0
        %602 = vmatpush1.bf16.msra.mxu0 0
        %603 = vmatprep.subr.bf16.mxu0 0
        %604 = vmatpush1.bf16.msra.mxu0 0
        %605 = vmatprep.subr.bf16.mxu0 0
        %606 = vmatpush1.bf16.msra.mxu0 0
        %607 = vmatprep.subr.bf16.mxu0 0
        %608 = vmatpush1.bf16.msra.mxu0 0
        %609 = vmatprep.subr.bf16.mxu0 0
        %610 = vmatpush1.bf16.msra.mxu0 0
        %611 = vmatprep.subr.bf16.mxu0 0
        %612 = vmatpush1.bf16.msra.mxu0 0
        %613 = vmatprep.subr.bf16.mxu0 0
        %614 = vmatpush1.bf16.msra.mxu0 0
        %615 = vmatprep.mubr.bf16.mxu0 0
        %616 = vmatmul.mubr.bf16.gmra.mrb[0].mxu0 %v572
        %v617 = vpop.f32.mrb[0].mxu0
        %v618 = vadd.f32 0.0, %v617
        %v619 = vpop.f32.mrb[0].mxu0
        %v620 = vadd.f32 0.0, %v619
        %v621 = vpop.f32.mrb[0].mxu0
        %v622 = vpop.f32.mrb[0].mxu0
        %623 = vdwg.mxu0
        %624 = vmatprep.subr.bf16.mxu0 0
        %625 = vmatpush1.bf16.msra.mxu0 %v581
        %626 = vmatprep.subr.bf16.mxu0 0
        %627 = vmatpush1.bf16.msra.mxu0 0
        %628 = vmatprep.subr.bf16.mxu0 0
        %629 = vmatpush1.bf16.msra.mxu0 0
        %630 = vmatprep.subr.bf16.mxu0 0
        %631 = vmatpush1.bf16.msra.mxu0 0
        %632 = vmatprep.subr.bf16.mxu0 0
        %633 = vmatpush1.bf16.msra.mxu0 0
        %634 = vmatprep.subr.bf16.mxu0 0
        %635 = vmatpush1.bf16.msra.mxu0 0
        %636 = vmatprep.subr.bf16.mxu0 0
        %637 = vmatpush1.bf16.msra.mxu0 0
        %638 = vmatprep.subr.bf16.mxu0 0
        %639 = vmatpush1.bf16.msra.mxu0 0
        %640 = vmatprep.subr.bf16.mxu0 0
        %641 = vmatpush1.bf16.msra.mxu0 0
        %642 = vmatprep.subr.bf16.mxu0 0
        %643 = vmatpush1.bf16.msra.mxu0 0
        %644 = vmatprep.subr.bf16.mxu0 0
        %645 = vmatpush1.bf16.msra.mxu0 0
        %646 = vmatprep.subr.bf16.mxu0 0
        %647 = vmatpush1.bf16.msra.mxu0 0
        %648 = vmatprep.subr.bf16.mxu0 0
        %649 = vmatpush1.bf16.msra.mxu0 0
        %650 = vmatprep.subr.bf16.mxu0 0
        %651 = vmatpush1.bf16.msra.mxu0 0
        %652 = vmatprep.subr.bf16.mxu0 0
        %653 = vmatpush1.bf16.msra.mxu0 0
        %654 = vmatprep.subr.bf16.mxu0 0
        %655 = vmatpush1.bf16.msra.mxu0 0
        %656 = vmatprep.mubr.bf16.mxu0 0
        %657 = vmatmul.mubr.bf16.gmra.mrb[0].mxu0 %v572
        %v658 = vpop.f32.mrb[0].mxu0
        %v659 = vadd.f32 0.0, %v658
        %v660 = vpop.f32.mrb[0].mxu0
        %v661 = vpop.f32.mrb[0].mxu0
        %v662 = vpop.f32.mrb[0].mxu0
        %663 = vdwg.mxu0
        %v664 = vadd.f32 %v553, %v618
        %v665 = vadd.f32 %v554, %v620
        %v666 = vadd.f32 %v555, %v659
        %v667 = vld [vmem:[%s1] sm:$0xf]
        %v669 = vunpack.c.l.b16 %v667
        %v670 = vpack.c.b16 %v669, %v669
        %671 = vrot.lane.b32.xlu0 %v670, 112
        %v672 = vpop.permute.xlu0 %671
        %673 = vrot.lane.b32.xlu0 %v239, 109
        %v674 = vpop.permute.xlu0 %673
        %675 = vrot.lane.b32.xlu0 %v247, 109
        %v676 = vpop.permute.xlu0 %675
        %677 = vrot.lane.b32.xlu0 %v246, 109
        %v678 = vpop.permute.xlu0 %677
        %vm679 = vcmask 891904
        %v680 = vsel %vm679, %v674, %v676
        %v681 = vsel %vm679, %v676, %v678
        %v683 = vsel %vm257, %v672, 0
        %v686 = vsel %vm261, %v680, 0
        %v689 = vsel %vm261, %v681, 0
        %v692 = vsel %vm261, %v678, 0
        %694 = vmatprep.subr.bf16.mxu0 %v689
        %695 = vmatpush1.bf16.msra.mxu0 %v686
        %696 = vmatprep.subr.bf16.mxu0 0
        %697 = vmatpush1.bf16.msra.mxu0 0
        %698 = vmatprep.subr.bf16.mxu0 0
        %699 = vmatpush1.bf16.msra.mxu0 0
        %700 = vmatprep.subr.bf16.mxu0 0
        %701 = vmatpush1.bf16.msra.mxu0 0
        %702 = vmatprep.subr.bf16.mxu0 0
        %703 = vmatpush1.bf16.msra.mxu0 0
        %704 = vmatprep.subr.bf16.mxu0 0
        %705 = vmatpush1.bf16.msra.mxu0 0
        %706 = vmatprep.subr.bf16.mxu0 0
        %707 = vmatpush1.bf16.msra.mxu0 0
        %708 = vmatprep.subr.bf16.mxu0 0
        %709 = vmatpush1.bf16.msra.mxu0 0
        %710 = vmatprep.subr.bf16.mxu0 0
        %711 = vmatpush1.bf16.msra.mxu0 0
        %712 = vmatprep.subr.bf16.mxu0 0
        %713 = vmatpush1.bf16.msra.mxu0 0
        %714 = vmatprep.subr.bf16.mxu0 0
        %715 = vmatpush1.bf16.msra.mxu0 0
        %716 = vmatprep.subr.bf16.mxu0 0
        %717 = vmatpush1.bf16.msra.mxu0 0
        %718 = vmatprep.subr.bf16.mxu0 0
        %719 = vmatpush1.bf16.msra.mxu0 0
        %720 = vmatprep.subr.bf16.mxu0 0
        %721 = vmatpush1.bf16.msra.mxu0 0
        %722 = vmatprep.subr.bf16.mxu0 0
        %723 = vmatpush1.bf16.msra.mxu0 0
        %724 = vmatprep.subr.bf16.mxu0 0
        %725 = vmatpush1.bf16.msra.mxu0 0
        %726 = vmatprep.mubr.bf16.mxu0 0
        %727 = vmatmul.mubr.bf16.gmra.mrb[0].mxu0 %v683
        %v728 = vpop.f32.mrb[0].mxu0
        %v729 = vadd.f32 0.0, %v728
        %v730 = vpop.f32.mrb[0].mxu0
        %v731 = vadd.f32 0.0, %v730
        %v732 = vpop.f32.mrb[0].mxu0
        %v733 = vpop.f32.mrb[0].mxu0
        %734 = vdwg.mxu0
        %735 = vmatprep.subr.bf16.mxu0 0
        %736 = vmatpush1.bf16.msra.mxu0 %v692
        %737 = vmatprep.subr.bf16.mxu0 0
        %738 = vmatpush1.bf16.msra.mxu0 0
        %739 = vmatprep.subr.bf16.mxu0 0
        %740 = vmatpush1.bf16.msra.mxu0 0
        %741 = vmatprep.subr.bf16.mxu0 0
        %742 = vmatpush1.bf16.msra.mxu0 0
        %743 = vmatprep.subr.bf16.mxu0 0
        %744 = vmatpush1.bf16.msra.mxu0 0
        %745 = vmatprep.subr.bf16.mxu0 0
        %746 = vmatpush1.bf16.msra.mxu0 0
        %747 = vmatprep.subr.bf16.mxu0 0
        %748 = vmatpush1.bf16.msra.mxu0 0
        %749 = vmatprep.subr.bf16.mxu0 0
        %750 = vmatpush1.bf16.msra.mxu0 0
        %751 = vmatprep.subr.bf16.mxu0 0
        %752 = vmatpush1.bf16.msra.mxu0 0
        %753 = vmatprep.subr.bf16.mxu0 0
        %754 = vmatpush1.bf16.msra.mxu0 0
        %755 = vmatprep.subr.bf16.mxu0 0
        %756 = vmatpush1.bf16.msra.mxu0 0
        %757 = vmatprep.subr.bf16.mxu0 0
        %758 = vmatpush1.bf16.msra.mxu0 0
        %759 = vmatprep.subr.bf16.mxu0 0
        %760 = vmatpush1.bf16.msra.mxu0 0
        %761 = vmatprep.subr.bf16.mxu0 0
        %762 = vmatpush1.bf16.msra.mxu0 0
        %763 = vmatprep.subr.bf16.mxu0 0
        %764 = vmatpush1.bf16.msra.mxu0 0
        %765 = vmatprep.subr.bf16.mxu0 0
        %766 = vmatpush1.bf16.msra.mxu0 0
        %767 = vmatprep.mubr.bf16.mxu0 0
        %768 = vmatmul.mubr.bf16.gmra.mrb[0].mxu0 %v683
        %v769 = vpop.f32.mrb[0].mxu0
        %v770 = vadd.f32 0.0, %v769
        %v771 = vpop.f32.mrb[0].mxu0
        %v772 = vpop.f32.mrb[0].mxu0
        %v773 = vpop.f32.mrb[0].mxu0
        %774 = vdwg.mxu0
        %v775 = vadd.f32 %v664, %v729
        %v776 = vadd.f32 %v665, %v731
        %v777 = vadd.f32 %v666, %v770
        %v778 = vld [vmem:[%s1] sm:$0xf]
        %v780 = vunpack.c.l.b16 %v778
        %v781 = vpack.c.b16 %v780, %v780
        %782 = vrot.lane.b32.xlu0 %v781, 108
        %v783 = vpop.permute.xlu0 %782
        %784 = vrot.lane.b32.xlu0 %v239, 108
        %v785 = vpop.permute.xlu0 %784
        %786 = vrot.lane.b32.xlu0 %v247, 108
        %v787 = vpop.permute.xlu0 %786
        %788 = vrot.lane.b32.xlu0 %v246, 108
        %v789 = vpop.permute.xlu0 %788
        %vm790 = vcmask 883712
        %v791 = vsel %vm790, %v785, %v787
        %v792 = vsel %vm790, %v787, %v789
        %v794 = vsel %vm257, %v783, 0
        %v797 = vsel %vm261, %v791, 0
        %v800 = vsel %vm261, %v792, 0
        %v803 = vsel %vm261, %v789, 0
        %805 = vmatprep.subr.bf16.mxu0 %v800
        %806 = vmatpush1.bf16.msra.mxu0 %v797
        %807 = vmatprep.subr.bf16.mxu0 0
        %808 = vmatpush1.bf16.msra.mxu0 0
        %809 = vmatprep.subr.bf16.mxu0 0
        %810 = vmatpush1.bf16.msra.mxu0 0
        %811 = vmatprep.subr.bf16.mxu0 0
        %812 = vmatpush1.bf16.msra.mxu0 0
        %813 = vmatprep.subr.bf16.mxu0 0
        %814 = vmatpush1.bf16.msra.mxu0 0
        %815 = vmatprep.subr.bf16.mxu0 0
        %816 = vmatpush1.bf16.msra.mxu0 0
        %817 = vmatprep.subr.bf16.mxu0 0
        %818 = vmatpush1.bf16.msra.mxu0 0
        %819 = vmatprep.subr.bf16.mxu0 0
        %820 = vmatpush1.bf16.msra.mxu0 0
        %821 = vmatprep.subr.bf16.mxu0 0
        %822 = vmatpush1.bf16.msra.mxu0 0
        %823 = vmatprep.subr.bf16.mxu0 0
        %824 = vmatpush1.bf16.msra.mxu0 0
        %825 = vmatprep.subr.bf16.mxu0 0
        %826 = vmatpush1.bf16.msra.mxu0 0
        %827 = vmatprep.subr.bf16.mxu0 0
        %828 = vmatpush1.bf16.msra.mxu0 0
        %829 = vmatprep.subr.bf16.mxu0 0
        %830 = vmatpush1.bf16.msra.mxu0 0
        %831 = vmatprep.subr.bf16.mxu0 0
        %832 = vmatpush1.bf16.msra.mxu0 0
        %833 = vmatprep.subr.bf16.mxu0 0
        %834 = vmatpush1.bf16.msra.mxu0 0
        %835 = vmatprep.subr.bf16.mxu0 0
        %836 = vmatpush1.bf16.msra.mxu0 0
        %837 = vmatprep.mubr.bf16.mxu0 0
        %838 = vmatmul.mubr.bf16.gmra.mrb[0].mxu0 %v794
        %v839 = vpop.f32.mrb[0].mxu0
        %v840 = vadd.f32 0.0, %v839
        %v841 = vpop.f32.mrb[0].mxu0
        %v842 = vadd.f32 0.0, %v841
        %v843 = vpop.f32.mrb[0].mxu0
        %v844 = vpop.f32.mrb[0].mxu0
        %845 = vdwg.mxu0
        %846 = vmatprep.subr.bf16.mxu0 0
        %847 = vmatpush1.bf16.msra.mxu0 %v803
        %848 = vmatprep.subr.bf16.mxu0 0
        %849 = vmatpush1.bf16.msra.mxu0 0
        %850 = vmatprep.subr.bf16.mxu0 0
        %851 = vmatpush1.bf16.msra.mxu0 0
        %852 = vmatprep.subr.bf16.mxu0 0
        %853 = vmatpush1.bf16.msra.mxu0 0
        %854 = vmatprep.subr.bf16.mxu0 0
        %855 = vmatpush1.bf16.msra.mxu0 0
        %856 = vmatprep.subr.bf16.mxu0 0
        %857 = vmatpush1.bf16.msra.mxu0 0
        %858 = vmatprep.subr.bf16.mxu0 0
        %859 = vmatpush1.bf16.msra.mxu0 0
        %860 = vmatprep.subr.bf16.mxu0 0
        %861 = vmatpush1.bf16.msra.mxu0 0
        %862 = vmatprep.subr.bf16.mxu0 0
        %863 = vmatpush1.bf16.msra.mxu0 0
        %864 = vmatprep.subr.bf16.mxu0 0
        %865 = vmatpush1.bf16.msra.mxu0 0
        %866 = vmatprep.subr.bf16.mxu0 0
        %867 = vmatpush1.bf16.msra.mxu0 0
        %868 = vmatprep.subr.bf16.mxu0 0
        %869 = vmatpush1.bf16.msra.mxu0 0
        %870 = vmatprep.subr.bf16.mxu0 0
        %871 = vmatpush1.bf16.msra.mxu0 0
        %872 = vmatprep.subr.bf16.mxu0 0
        %873 = vmatpush1.bf16.msra.mxu0 0
        %874 = vmatprep.subr.bf16.mxu0 0
        %875 = vmatpush1.bf16.msra.mxu0 0
        %876 = vmatprep.subr.bf16.mxu0 0
        %877 = vmatpush1.bf16.msra.mxu0 0
        %878 = vmatprep.mubr.bf16.mxu0 0
        %879 = vmatmul.mubr.bf16.gmra.mrb[0].mxu0 %v794
        %v880 = vpop.f32.mrb[0].mxu0
        %v881 = vadd.f32 0.0, %v880
        %v882 = vpop.f32.mrb[0].mxu0
        %v883 = vpop.f32.mrb[0].mxu0
        %v884 = vpop.f32.mrb[0].mxu0
        %885 = vdwg.mxu0
        %v886 = vadd.f32 %v775, %v840
        %v887 = vadd.f32 %v776, %v842
        %v888 = vadd.f32 %v777, %v881
        %v889 = vld [vmem:[%s1] sm:$0xf]
        %v891 = vunpack.c.l.b16 %v889
        %v892 = vpack.c.b16 %v891, %v891
        %893 = vrot.lane.b32.xlu0 %v892, 104
        %v894 = vpop.permute.xlu0 %893
        %895 = vrot.lane.b32.xlu0 %v239, 92
        %v896 = vpop.permute.xlu0 %895
        %897 = vrot.lane.b32.xlu0 %v247, 92
        %v898 = vpop.permute.xlu0 %897
        %899 = vrot.lane.b32.xlu0 %v246, 92
        %v900 = vpop.permute.xlu0 %899
        %vm901 = vcmask 752640
        %v902 = vsel %vm901, %v896, %v898
        %v903 = vsel %vm901, %v898, %v900
        %v905 = vsel %vm257, %v894, 0
        %v908 = vsel %vm261, %v902, 0
        %v911 = vsel %vm261, %v903, 0
        %v914 = vsel %vm261, %v900, 0
        %916 = vmatprep.subr.bf16.mxu0 %v911
        %917 = vmatpush1.bf16.msra.mxu0 %v908
        %918 = vmatprep.subr.bf16.mxu0 0
        %919 = vmatpush1.bf16.msra.mxu0 0
        %920 = vmatprep.subr.bf16.mxu0 0
        %921 = vmatpush1.bf16.msra.mxu0 0
        %922 = vmatprep.subr.bf16.mxu0 0
        %923 = vmatpush1.bf16.msra.mxu0 0
        %924 = vmatprep.subr.bf16.mxu0 0
        %925 = vmatpush1.bf16.msra.mxu0 0
        %926 = vmatprep.subr.bf16.mxu0 0
        %927 = vmatpush1.bf16.msra.mxu0 0
        %928 = vmatprep.subr.bf16.mxu0 0
        %929 = vmatpush1.bf16.msra.mxu0 0
        %930 = vmatprep.subr.bf16.mxu0 0
        %931 = vmatpush1.bf16.msra.mxu0 0
        %932 = vmatprep.subr.bf16.mxu0 0
        %933 = vmatpush1.bf16.msra.mxu0 0
        %934 = vmatprep.subr.bf16.mxu0 0
        %935 = vmatpush1.bf16.msra.mxu0 0
        %936 = vmatprep.subr.bf16.mxu0 0
        %937 = vmatpush1.bf16.msra.mxu0 0
        %938 = vmatprep.subr.bf16.mxu0 0
        %939 = vmatpush1.bf16.msra.mxu0 0
        %940 = vmatprep.subr.bf16.mxu0 0
        %941 = vmatpush1.bf16.msra.mxu0 0
        %942 = vmatprep.subr.bf16.mxu0 0
        %943 = vmatpush1.bf16.msra.mxu0 0
        %944 = vmatprep.subr.bf16.mxu0 0
        %945 = vmatpush1.bf16.msra.mxu0 0
        %946 = vmatprep.subr.bf16.mxu0 0
        %947 = vmatpush1.bf16.msra.mxu0 0
        %948 = vmatprep.mubr.bf16.mxu0 0
        %949 = vmatmul.mubr.bf16.gmra.mrb[0].mxu0 %v905
        %v950 = vpop.f32.mrb[0].mxu0
        %v951 = vadd.f32 0.0, %v950
        %v952 = vpop.f32.mrb[0].mxu0
        %v953 = vadd.f32 0.0, %v952
        %v954 = vpop.f32.mrb[0].mxu0
        %v955 = vpop.f32.mrb[0].mxu0
        %956 = vdwg.mxu0
        %957 = vmatprep.subr.bf16.mxu0 0
        %958 = vmatpush1.bf16.msra.mxu0 %v914
        %959 = vmatprep.subr.bf16.mxu0 0
        %960 = vmatpush1.bf16.msra.mxu0 0
        %961 = vmatprep.subr.bf16.mxu0 0
        %962 = vmatpush1.bf16.msra.mxu0 0
        %963 = vmatprep.subr.bf16.mxu0 0
        %964 = vmatpush1.bf16.msra.mxu0 0
        %965 = vmatprep.subr.bf16.mxu0 0
        %966 = vmatpush1.bf16.msra.mxu0 0
        %967 = vmatprep.subr.bf16.mxu0 0
        %968 = vmatpush1.bf16.msra.mxu0 0
        %969 = vmatprep.subr.bf16.mxu0 0
        %970 = vmatpush1.bf16.msra.mxu0 0
        %971 = vmatprep.subr.bf16.mxu0 0
        %972 = vmatpush1.bf16.msra.mxu0 0
        %973 = vmatprep.subr.bf16.mxu0 0
        %974 = vmatpush1.bf16.msra.mxu0 0
        %975 = vmatprep.subr.bf16.mxu0 0
        %976 = vmatpush1.bf16.msra.mxu0 0
        %977 = vmatprep.subr.bf16.mxu0 0
        %978 = vmatpush1.bf16.msra.mxu0 0
        %979 = vmatprep.subr.bf16.mxu0 0
        %980 = vmatpush1.bf16.msra.mxu0 0
        %981 = vmatprep.subr.bf16.mxu0 0
        %982 = vmatpush1.bf16.msra.mxu0 0
        %983 = vmatprep.subr.bf16.mxu0 0
        %984 = vmatpush1.bf16.msra.mxu0 0
        %985 = vmatprep.subr.bf16.mxu0 0
        %986 = vmatpush1.bf16.msra.mxu0 0
        %987 = vmatprep.subr.bf16.mxu0 0
        %988 = vmatpush1.bf16.msra.mxu0 0
        %989 = vmatprep.mubr.bf16.mxu0 0
        %990 = vmatmul.mubr.bf16.gmra.mrb[0].mxu0 %v905
        %v991 = vpop.f32.mrb[0].mxu0
        %v992 = vadd.f32 0.0, %v991
        %v993 = vpop.f32.mrb[0].mxu0
        %v994 = vpop.f32.mrb[0].mxu0
        %v995 = vpop.f32.mrb[0].mxu0
        %996 = vdwg.mxu0
        %v997 = vadd.f32 %v886, %v951
        %v998 = vadd.f32 %v887, %v953
        %v999 = vadd.f32 %v888, %v992
        %v1000 = vld [vmem:[%s1] sm:$0xf]
        %v1002 = vunpack.c.l.b16 %v1000
        %v1003 = vpack.c.b16 %v1002, %v1002
        %1004 = vrot.lane.b32.xlu0 %v1003, 100
        %v1005 = vpop.permute.xlu0 %1004
        %1006 = vrot.lane.b32.xlu0 %v239, 91
        %v1007 = vpop.permute.xlu0 %1006
        %1008 = vrot.lane.b32.xlu0 %v247, 91
        %v1009 = vpop.permute.xlu0 %1008
        %1010 = vrot.lane.b32.xlu0 %v246, 91
        %v1011 = vpop.permute.xlu0 %1010
        %vm1012 = vcmask 744448
        %v1013 = vsel %vm1012, %v1007, %v1009
        %v1014 = vsel %vm1012, %v1009, %v1011
        %v1016 = vsel %vm257, %v1005, 0
        %v1019 = vsel %vm261, %v1013, 0
        %v1022 = vsel %vm261, %v1014, 0
        %v1025 = vsel %vm261, %v1011, 0
        %1027 = vmatprep.subr.bf16.mxu0 %v1022
        %1028 = vmatpush1.bf16.msra.mxu0 %v1019
        %1029 = vmatprep.subr.bf16.mxu0 0
        %1030 = vmatpush1.bf16.msra.mxu0 0
        %1031 = vmatprep.subr.bf16.mxu0 0
        %1032 = vmatpush1.bf16.msra.mxu0 0
        %1033 = vmatprep.subr.bf16.mxu0 0
        %1034 = vmatpush1.bf16.msra.mxu0 0
        %1035 = vmatprep.subr.bf16.mxu0 0
        %1036 = vmatpush1.bf16.msra.mxu0 0
        %1037 = vmatprep.subr.bf16.mxu0 0
        %1038 = vmatpush1.bf16.msra.mxu0 0
        %1039 = vmatprep.subr.bf16.mxu0 0
        %1040 = vmatpush1.bf16.msra.mxu0 0
        %1041 = vmatprep.subr.bf16.mxu0 0
        %1042 = vmatpush1.bf16.msra.mxu0 0
        %1043 = vmatprep.subr.bf16.mxu0 0
        %1044 = vmatpush1.bf16.msra.mxu0 0
        %1045 = vmatprep.subr.bf16.mxu0 0
        %1046 = vmatpush1.bf16.msra.mxu0 0
        %1047 = vmatprep.subr.bf16.mxu0 0
        %1048 = vmatpush1.bf16.msra.mxu0 0
        %1049 = vmatprep.subr.bf16.mxu0 0
        %1050 = vmatpush1.bf16.msra.mxu0 0
        %1051 = vmatprep.subr.bf16.mxu0 0
        %1052 = vmatpush1.bf16.msra.mxu0 0
        %1053 = vmatprep.subr.bf16.mxu0 0
        %1054 = vmatpush1.bf16.msra.mxu0 0
        %1055 = vmatprep.subr.bf16.mxu0 0
        %1056 = vmatpush1.bf16.msra.mxu0 0
        %1057 = vmatprep.subr.bf16.mxu0 0
        %1058 = vmatpush1.bf16.msra.mxu0 0
        %1059 = vmatprep.mubr.bf16.mxu0 0
        %1060 = vmatmul.mubr.bf16.gmra.mrb[0].mxu0 %v1016
        %v1061 = vpop.f32.mrb[0].mxu0
        %v1062 = vadd.f32 0.0, %v1061
        %v1063 = vpop.f32.mrb[0].mxu0
        %v1064 = vadd.f32 0.0, %v1063
        %v1065 = vpop.f32.mrb[0].mxu0
        %v1066 = vpop.f32.mrb[0].mxu0
        %1067 = vdwg.mxu0
        %1068 = vmatprep.subr.bf16.mxu0 0
        %1069 = vmatpush1.bf16.msra.mxu0 %v1025
        %1070 = vmatprep.subr.bf16.mxu0 0
        %1071 = vmatpush1.bf16.msra.mxu0 0
        %1072 = vmatprep.subr.bf16.mxu0 0
        %1073 = vmatpush1.bf16.msra.mxu0 0
        %1074 = vmatprep.subr.bf16.mxu0 0
        %1075 = vmatpush1.bf16.msra.mxu0 0
        %1076 = vmatprep.subr.bf16.mxu0 0
        %1077 = vmatpush1.bf16.msra.mxu0 0
        %1078 = vmatprep.subr.bf16.mxu0 0
        %1079 = vmatpush1.bf16.msra.mxu0 0
        %1080 = vmatprep.subr.bf16.mxu0 0
        %1081 = vmatpush1.bf16.msra.mxu0 0
        %1082 = vmatprep.subr.bf16.mxu0 0
        %1083 = vmatpush1.bf16.msra.mxu0 0
        %1084 = vmatprep.subr.bf16.mxu0 0
        %1085 = vmatpush1.bf16.msra.mxu0 0
        %1086 = vmatprep.subr.bf16.mxu0 0
        %1087 = vmatpush1.bf16.msra.mxu0 0
        %1088 = vmatprep.subr.bf16.mxu0 0
        %1089 = vmatpush1.bf16.msra.mxu0 0
        %1090 = vmatprep.subr.bf16.mxu0 0
        %1091 = vmatpush1.bf16.msra.mxu0 0
        %1092 = vmatprep.subr.bf16.mxu0 0
        %1093 = vmatpush1.bf16.msra.mxu0 0
        %1094 = vmatprep.subr.bf16.mxu0 0
        %1095 = vmatpush1.bf16.msra.mxu0 0
        %1096 = vmatprep.subr.bf16.mxu0 0
        %1097 = vmatpush1.bf16.msra.mxu0 0
        %1098 = vmatprep.subr.bf16.mxu0 0
        %1099 = vmatpush1.bf16.msra.mxu0 0
        %1100 = vmatprep.mubr.bf16.mxu0 0
        %1101 = vmatmul.mubr.bf16.gmra.mrb[0].mxu0 %v1016
        %v1102 = vpop.f32.mrb[0].mxu0
        %v1103 = vadd.f32 0.0, %v1102
        %v1104 = vpop.f32.mrb[0].mxu0
        %v1105 = vpop.f32.mrb[0].mxu0
        %v1106 = vpop.f32.mrb[0].mxu0
        %1107 = vdwg.mxu0
        %v1108 = vadd.f32 %v997, %v1062
        %v1109 = vadd.f32 %v998, %v1064
        %v1110 = vadd.f32 %v999, %v1103
        %v1111 = vld [vmem:[%s1] sm:$0xf]
        %v1113 = vunpack.c.l.b16 %v1111
        %v1114 = vpack.c.b16 %v1113, %v1113
        %1115 = vrot.lane.b32.xlu0 %v1114, 96
        %v1116 = vpop.permute.xlu0 %1115
        %1117 = vrot.lane.b32.xlu0 %v239, 90
        %v1118 = vpop.permute.xlu0 %1117
        %1119 = vrot.lane.b32.xlu0 %v247, 90
        %v1120 = vpop.permute.xlu0 %1119
        %1121 = vrot.lane.b32.xlu0 %v246, 90
        %v1122 = vpop.permute.xlu0 %1121
        %vm1123 = vcmask 736256
        %v1124 = vsel %vm1123, %v1118, %v1120
        %v1125 = vsel %vm1123, %v1120, %v1122
        %v1127 = vsel %vm257, %v1116, 0
        %v1130 = vsel %vm261, %v1124, 0
        %v1133 = vsel %vm261, %v1125, 0
        %v1136 = vsel %vm261, %v1122, 0
        %1138 = vmatprep.subr.bf16.mxu0 %v1133
        %1139 = vmatpush1.bf16.msra.mxu0 %v1130
        %1140 = vmatprep.subr.bf16.mxu0 0
        %1141 = vmatpush1.bf16.msra.mxu0 0
        %1142 = vmatprep.subr.bf16.mxu0 0
        %1143 = vmatpush1.bf16.msra.mxu0 0
        %1144 = vmatprep.subr.bf16.mxu0 0
        %1145 = vmatpush1.bf16.msra.mxu0 0
        %1146 = vmatprep.subr.bf16.mxu0 0
        %1147 = vmatpush1.bf16.msra.mxu0 0
        %1148 = vmatprep.subr.bf16.mxu0 0
        %1149 = vmatpush1.bf16.msra.mxu0 0
        %1150 = vmatprep.subr.bf16.mxu0 0
        %1151 = vmatpush1.bf16.msra.mxu0 0
        %1152 = vmatprep.subr.bf16.mxu0 0
        %1153 = vmatpush1.bf16.msra.mxu0 0
        %1154 = vmatprep.subr.bf16.mxu0 0
        %1155 = vmatpush1.bf16.msra.mxu0 0
        %1156 = vmatprep.subr.bf16.mxu0 0
        %1157 = vmatpush1.bf16.msra.mxu0 0
        %1158 = vmatprep.subr.bf16.mxu0 0
        %1159 = vmatpush1.bf16.msra.mxu0 0
        %1160 = vmatprep.subr.bf16.mxu0 0
        %1161 = vmatpush1.bf16.msra.mxu0 0
        %1162 = vmatprep.subr.bf16.mxu0 0
        %1163 = vmatpush1.bf16.msra.mxu0 0
        %1164 = vmatprep.subr.bf16.mxu0 0
        %1165 = vmatpush1.bf16.msra.mxu0 0
        %1166 = vmatprep.subr.bf16.mxu0 0
        %1167 = vmatpush1.bf16.msra.mxu0 0
        %1168 = vmatprep.subr.bf16.mxu0 0
        %1169 = vmatpush1.bf16.msra.mxu0 0
        %1170 = vmatprep.mubr.bf16.mxu0 0
        %1171 = vmatmul.mubr.bf16.gmra.mrb[0].mxu0 %v1127
        %v1172 = vpop.f32.mrb[0].mxu0
        %v1173 = vadd.f32 0.0, %v1172
        %v1174 = vpop.f32.mrb[0].mxu0
        %v1175 = vadd.f32 0.0, %v1174
        %v1176 = vpop.f32.mrb[0].mxu0
        %v1177 = vpop.f32.mrb[0].mxu0
        %1178 = vdwg.mxu0
        %1179 = vmatprep.subr.bf16.mxu0 0
        %1180 = vmatpush1.bf16.msra.mxu0 %v1136
        %1181 = vmatprep.subr.bf16.mxu0 0
        %1182 = vmatpush1.bf16.msra.mxu0 0
        %1183 = vmatprep.subr.bf16.mxu0 0
        %1184 = vmatpush1.bf16.msra.mxu0 0
        %1185 = vmatprep.subr.bf16.mxu0 0
        %1186 = vmatpush1.bf16.msra.mxu0 0
        %1187 = vmatprep.subr.bf16.mxu0 0
        %1188 = vmatpush1.bf16.msra.mxu0 0
        %1189 = vmatprep.subr.bf16.mxu0 0
        %1190 = vmatpush1.bf16.msra.mxu0 0
        %1191 = vmatprep.subr.bf16.mxu0 0
        %1192 = vmatpush1.bf16.msra.mxu0 0
        %1193 = vmatprep.subr.bf16.mxu0 0
        %1194 = vmatpush1.bf16.msra.mxu0 0
        %1195 = vmatprep.subr.bf16.mxu0 0
        %1196 = vmatpush1.bf16.msra.mxu0 0
        %1197 = vmatprep.subr.bf16.mxu0 0
        %1198 = vmatpush1.bf16.msra.mxu0 0
        %1199 = vmatprep.subr.bf16.mxu0 0
        %1200 = vmatpush1.bf16.msra.mxu0 0
        %1201 = vmatprep.subr.bf16.mxu0 0
        %1202 = vmatpush1.bf16.msra.mxu0 0
        %1203 = vmatprep.subr.bf16.mxu0 0
        %1204 = vmatpush1.bf16.msra.mxu0 0
        %1205 = vmatprep.subr.bf16.mxu0 0
        %1206 = vmatpush1.bf16.msra.mxu0 0
        %1207 = vmatprep.subr.bf16.mxu0 0
        %1208 = vmatpush1.bf16.msra.mxu0 0
        %1209 = vmatprep.subr.bf16.mxu0 0
        %1210 = vmatpush1.bf16.msra.mxu0 0
        %1211 = vmatprep.mubr.bf16.mxu0 0
        %1212 = vmatmul.mubr.bf16.gmra.mrb[0].mxu0 %v1127
        %v1213 = vpop.f32.mrb[0].mxu0
        %v1214 = vadd.f32 0.0, %v1213
        %v1215 = vpop.f32.mrb[0].mxu0
        %v1216 = vpop.f32.mrb[0].mxu0
        %v1217 = vpop.f32.mrb[0].mxu0
        %1218 = vdwg.mxu0
        %v1219 = vadd.f32 %v1108, %v1173
        %v1220 = vadd.f32 %v1109, %v1175
        %v1221 = vadd.f32 %v1110, %v1214
        %v1222 = vlaneseq
        %v1223 = vand.u32 %v1222, 127
        %v1224 = vadd.s32 %v1223, 128
        %v1225 = vadd.s32 %v1223, 256
        %vm1226 = vcmp.lt.s32.totalorder %v1223, 0
        %v1227 = vsub.s32 0, %v1223
        %v1228 = vsel %vm1226, %v1227, %v1223
        %v1229 = vmul.u32.u64.compose %v1228, 3817748708
        %v1230 = vextract.low.u32 %v1229
        %v1231 = vextract.high.u32 %v1229
        %v1232 = vshrl.u32 %v1231, 4
        %v1233 = vmul.u32 %v1232, 18
        %v1234 = vsub.s32 %v1228, %v1233
        %v1235 = vsub.s32 0, %v1234
        %v1236 = vsel %vm1226, %v1235, %v1234
        %vm1237 = vcmp.lt.s32.totalorder %v1224, 0
        %v1238 = vsub.s32 0, %v1224
        %v1239 = vsel %vm1237, %v1238, %v1224
        %v1240 = vmul.u32.u64.compose %v1239, 3817748708
        %v1241 = vextract.low.u32 %v1240
        %v1242 = vextract.high.u32 %v1240
        %v1243 = vshrl.u32 %v1242, 4
        %v1244 = vmul.u32 %v1243, 18
        %v1245 = vsub.s32 %v1239, %v1244
        %v1246 = vsub.s32 0, %v1245
        %v1247 = vsel %vm1237, %v1246, %v1245
        %vm1248 = vcmp.lt.s32.totalorder %v1225, 0
        %v1249 = vsub.s32 0, %v1225
        %v1250 = vsel %vm1248, %v1249, %v1225
        %v1251 = vmul.u32.u64.compose %v1250, 3817748708
        %v1252 = vextract.low.u32 %v1251
        %v1253 = vextract.high.u32 %v1251
        %v1254 = vshrl.u32 %v1253, 4
        %v1255 = vmul.u32 %v1254, 18
        %v1256 = vsub.s32 %v1250, %v1255
        %v1257 = vsub.s32 0, %v1256
        %v1258 = vsel %vm1248, %v1257, %v1256
        %vm1259 = vcmp.ne.s32.totalorder %v1236, 0
        %vm1260 = vcmp.ne.s32.totalorder %v1247, 0
        %vm1261 = vcmp.ne.s32.totalorder %v1258, 0
        %vm1262 = vcmp.lt.s32.totalorder %v1236, 0
        %vm1263 = vcmp.lt.s32.totalorder %v1247, 0
        %vm1264 = vcmp.lt.s32.totalorder %v1258, 0
        %vm1265 = vmand %vm1262, %vm1259
        %vm1266 = vmand %vm1263, %vm1260
        %vm1267 = vmand %vm1264, %vm1261
        %v1268 = vadd.s32 %v1236, 18
        %v1269 = vadd.s32 %v1247, 18
        %v1270 = vadd.s32 %v1258, 18
        %v1271 = vsel %vm1265, %v1268, %v1236
        %v1272 = vsel %vm1266, %v1269, %v1247
        %v1273 = vsel %vm1267, %v1270, %v1258
        %vm1274 = vcmp.lt.s32.totalorder %v1271, 16
        %vm1275 = vcmp.lt.s32.totalorder %v1272, 16
        %vm1276 = vcmp.lt.s32.totalorder %v1273, 16
        %v1277 = vld [vmem:[%s2] sm:$0xff]
        %1279 = vset.pattern.permute.xlu0 0
        %1280 = vperm.xlu0 %1279, %v1277
        %v1281 = vpop.permute.xlu0 %1280
        %v1283 = vadd.f32 %v1219, %v1281
        %v1284 = vadd.f32 %v1220, %v1281
        %v1285 = vadd.f32 %v1221, %v1281
        %v1286 = vmax.f32 %v1283, 0.0
        %v1287 = vmax.f32 %v1284, 0.0
        %v1288 = vmax.f32 %v1285, 0.0
        %v1289 = vsel %vm1274, 1, 0
        %v1290 = vsel %vm1275, 1, 0
        %v1291 = vsel %vm1276, 1, 0
        %vm1292 = vcmp.eq.s32.totalorder %v1289, 1
        %vm1293 = vcmp.eq.s32.totalorder %v1290, 1
        %vm1294 = vcmp.eq.s32.totalorder %v1291, 1
        %v1295 = vsel %vm1292, %v1286, 0.0
        %v1296 = vsel %vm1293, %v1287, 0.0
        %v1297 = vsel %vm1294, %v1288, 0.0
        %v1298 = vpack.c.bf16 %v1295, %v1295
        %v1299 = vpack.c.bf16 %v1296, %v1296
        %v1300 = vpack.c.bf16 %v1297, %v1297
        %1304 = vrot.lane.b32.xlu0 %v1298, 19
        %v1305 = vpop.permute.xlu0 %1304
        %1306 = vrot.lane.b32.xlu0 %v1299, 19
        %v1307 = vpop.permute.xlu0 %1306
        %1308 = vrot.lane.b32.xlu0 %v1300, 19
        %v1309 = vpop.permute.xlu0 %1308
        %vm1310 = vcmask 154624
        %v1311 = vsel %vm1310, %v1305, %v1307
        %v1312 = vsel %vm1310, %v1307, %v1309
        %vm1313 = vcmask 154624
        %v1316 = vsel %vm1313, 0, %v1305
        %vm1317 = vcmask 416768
        %v1319 = vsel %vm1317, %v1312, 0
        %v1320 = vld [vmem:[%s3] sm:$0xf]
        %v1322 = vunpack.c.l.b16 %v1320
        %v1323 = vpack.c.b16 %v1322, %v1322
        %1324 = vrot.lane.b32.xlu0 %v1323, 120
        %v1325 = vpop.permute.xlu0 %1324
        %1328 = vrot.lane.b32.xlu0 %v1316, 127
        %v1329 = vpop.permute.xlu0 %1328
        %1330 = vrot.lane.b32.xlu0 %v1311, 127
        %v1331 = vpop.permute.xlu0 %1330
        %1332 = vrot.lane.b32.xlu0 %v1319, 127
        %v1333 = vpop.permute.xlu0 %1332
        %v1334 = vsel %vm254, %v1329, %v1331
        %v1335 = vsel %vm254, %v1331, %v1333
        %vm1336 = vcmask 64512
        %v1338 = vsel %vm1336, %v1325, 0
        %vm1340 = vcmask 1043456
        %v1342 = vsel %vm1340, %v1334, 0
        %v1345 = vsel %vm1340, %v1335, 0
        %v1348 = vsel %vm1340, %v1333, 0
        %1350 = vmatprep.subr.bf16.mxu0 %v1345
        %1351 = vmatpush1.bf16.msra.mxu0 %v1342
        %1352 = vmatprep.subr.bf16.mxu0 0
        %1353 = vmatpush1.bf16.msra.mxu0 0
        %1354 = vmatprep.subr.bf16.mxu0 0
        %1355 = vmatpush1.bf16.msra.mxu0 0
        %1356 = vmatprep.subr.bf16.mxu0 0
        %1357 = vmatpush1.bf16.msra.mxu0 0
        %1358 = vmatprep.subr.bf16.mxu0 0
        %1359 = vmatpush1.bf16.msra.mxu0 0
        %1360 = vmatprep.subr.bf16.mxu0 0
        %1361 = vmatpush1.bf16.msra.mxu0 0
        %1362 = vmatprep.subr.bf16.mxu0 0
        %1363 = vmatpush1.bf16.msra.mxu0 0
        %1364 = vmatprep.subr.bf16.mxu0 0
        %1365 = vmatpush1.bf16.msra.mxu0 0
        %1366 = vmatprep.subr.bf16.mxu0 0
        %1367 = vmatpush1.bf16.msra.mxu0 0
        %1368 = vmatprep.subr.bf16.mxu0 0
        %1369 = vmatpush1.bf16.msra.mxu0 0
        %1370 = vmatprep.subr.bf16.mxu0 0
        %1371 = vmatpush1.bf16.msra.mxu0 0
        %1372 = vmatprep.subr.bf16.mxu0 0
        %1373 = vmatpush1.bf16.msra.mxu0 0
        %1374 = vmatprep.subr.bf16.mxu0 0
        %1375 = vmatpush1.bf16.msra.mxu0 0
        %1376 = vmatprep.subr.bf16.mxu0 0
        %1377 = vmatpush1.bf16.msra.mxu0 0
        %1378 = vmatprep.subr.bf16.mxu0 0
        %1379 = vmatpush1.bf16.msra.mxu0 0
        %1380 = vmatprep.subr.bf16.mxu0 0
        %1381 = vmatpush1.bf16.msra.mxu0 0
        %1382 = vmatprep.mubr.bf16.mxu0 0
        %1383 = vmatmul.mubr.bf16.gmra.mrb[0].mxu0 %v1338
        %v1384 = vpop.f32.mrb[0].mxu0
        %v1385 = vadd.f32 0.0, %v1384
        %v1386 = vpop.f32.mrb[0].mxu0
        %v1387 = vadd.f32 0.0, %v1386
        %v1388 = vpop.f32.mrb[0].mxu0
        %v1389 = vpop.f32.mrb[0].mxu0
        %1390 = vdwg.mxu0
        %1391 = vmatprep.subr.bf16.mxu0 0
        %1392 = vmatpush1.bf16.msra.mxu0 %v1348
        %1393 = vmatprep.subr.bf16.mxu0 0
        %1394 = vmatpush1.bf16.msra.mxu0 0
        %1395 = vmatprep.subr.bf16.mxu0 0
        %1396 = vmatpush1.bf16.msra.mxu0 0
        %1397 = vmatprep.subr.bf16.mxu0 0
        %1398 = vmatpush1.bf16.msra.mxu0 0
        %1399 = vmatprep.subr.bf16.mxu0 0
        %1400 = vmatpush1.bf16.msra.mxu0 0
        %1401 = vmatprep.subr.bf16.mxu0 0
        %1402 = vmatpush1.bf16.msra.mxu0 0
        %1403 = vmatprep.subr.bf16.mxu0 0
        %1404 = vmatpush1.bf16.msra.mxu0 0
        %1405 = vmatprep.subr.bf16.mxu0 0
        %1406 = vmatpush1.bf16.msra.mxu0 0
        %1407 = vmatprep.subr.bf16.mxu0 0
        %1408 = vmatpush1.bf16.msra.mxu0 0
        %1409 = vmatprep.subr.bf16.mxu0 0
        %1410 = vmatpush1.bf16.msra.mxu0 0
        %1411 = vmatprep.subr.bf16.mxu0 0
        %1412 = vmatpush1.bf16.msra.mxu0 0
        %1413 = vmatprep.subr.bf16.mxu0 0
        %1414 = vmatpush1.bf16.msra.mxu0 0
        %1415 = vmatprep.subr.bf16.mxu0 0
        %1416 = vmatpush1.bf16.msra.mxu0 0
        %1417 = vmatprep.subr.bf16.mxu0 0
        %1418 = vmatpush1.bf16.msra.mxu0 0
        %1419 = vmatprep.subr.bf16.mxu0 0
        %1420 = vmatpush1.bf16.msra.mxu0 0
        %1421 = vmatprep.subr.bf16.mxu0 0
        %1422 = vmatpush1.bf16.msra.mxu0 0
        %1423 = vmatprep.mubr.bf16.mxu0 0
        %1424 = vmatmul.mubr.bf16.gmra.mrb[0].mxu0 %v1338
        %v1425 = vpop.f32.mrb[0].mxu0
        %v1426 = vadd.f32 0.0, %v1425
        %v1427 = vpop.f32.mrb[0].mxu0
        %v1428 = vpop.f32.mrb[0].mxu0
        %v1429 = vpop.f32.mrb[0].mxu0
        %1430 = vdwg.mxu0
        %v1432 = vsel %vm1336, %v1320, 0
        %v1434 = vsel %vm1340, %v1316, 0
        %v1437 = vsel %vm1340, %v1311, 0
        %v1439 = vsel %vm1340, %v1319, 0
        %1441 = vmatprep.subr.bf16.mxu0 %v1437
        %1442 = vmatpush1.bf16.msra.mxu0 %v1434
        %1443 = vmatprep.subr.bf16.mxu0 0
        %1444 = vmatpush1.bf16.msra.mxu0 0
        %1445 = vmatprep.subr.bf16.mxu0 0
        %1446 = vmatpush1.bf16.msra.mxu0 0
        %1447 = vmatprep.subr.bf16.mxu0 0
        %1448 = vmatpush1.bf16.msra.mxu0 0
        %1449 = vmatprep.subr.bf16.mxu0 0
        %1450 = vmatpush1.bf16.msra.mxu0 0
        %1451 = vmatprep.subr.bf16.mxu0 0
        %1452 = vmatpush1.bf16.msra.mxu0 0
        %1453 = vmatprep.subr.bf16.mxu0 0
        %1454 = vmatpush1.bf16.msra.mxu0 0
        %1455 = vmatprep.subr.bf16.mxu0 0
        %1456 = vmatpush1.bf16.msra.mxu0 0
        %1457 = vmatprep.subr.bf16.mxu0 0
        %1458 = vmatpush1.bf16.msra.mxu0 0
        %1459 = vmatprep.subr.bf16.mxu0 0
        %1460 = vmatpush1.bf16.msra.mxu0 0
        %1461 = vmatprep.subr.bf16.mxu0 0
        %1462 = vmatpush1.bf16.msra.mxu0 0
        %1463 = vmatprep.subr.bf16.mxu0 0
        %1464 = vmatpush1.bf16.msra.mxu0 0
        %1465 = vmatprep.subr.bf16.mxu0 0
        %1466 = vmatpush1.bf16.msra.mxu0 0
        %1467 = vmatprep.subr.bf16.mxu0 0
        %1468 = vmatpush1.bf16.msra.mxu0 0
        %1469 = vmatprep.subr.bf16.mxu0 0
        %1470 = vmatpush1.bf16.msra.mxu0 0
        %1471 = vmatprep.subr.bf16.mxu0 0
        %1472 = vmatpush1.bf16.msra.mxu0 0
        %1473 = vmatprep.mubr.bf16.mxu0 0
        %1474 = vmatmul.mubr.bf16.gmra.mrb[0].mxu0 %v1432
        %v1475 = vpop.f32.mrb[0].mxu0
        %v1476 = vadd.f32 %v1385, %v1475
        %v1477 = vpop.f32.mrb[0].mxu0
        %v1478 = vadd.f32 %v1387, %v1477
        %v1479 = vpop.f32.mrb[0].mxu0
        %v1480 = vpop.f32.mrb[0].mxu0
        %1481 = vdwg.mxu0
        %1482 = vmatprep.subr.bf16.mxu0 0
        %1483 = vmatpush1.bf16.msra.mxu0 %v1439
        %1484 = vmatprep.subr.bf16.mxu0 0
        %1485 = vmatpush1.bf16.msra.mxu0 0
        %1486 = vmatprep.subr.bf16.mxu0 0
        %1487 = vmatpush1.bf16.msra.mxu0 0
        %1488 = vmatprep.subr.bf16.mxu0 0
        %1489 = vmatpush1.bf16.msra.mxu0 0
        %1490 = vmatprep.subr.bf16.mxu0 0
        %1491 = vmatpush1.bf16.msra.mxu0 0
        %1492 = vmatprep.subr.bf16.mxu0 0
        %1493 = vmatpush1.bf16.msra.mxu0 0
        %1494 = vmatprep.subr.bf16.mxu0 0
        %1495 = vmatpush1.bf16.msra.mxu0 0
        %1496 = vmatprep.subr.bf16.mxu0 0
        %1497 = vmatpush1.bf16.msra.mxu0 0
        %1498 = vmatprep.subr.bf16.mxu0 0
        %1499 = vmatpush1.bf16.msra.mxu0 0
        %1500 = vmatprep.subr.bf16.mxu0 0
        %1501 = vmatpush1.bf16.msra.mxu0 0
        %1502 = vmatprep.subr.bf16.mxu0 0
        %1503 = vmatpush1.bf16.msra.mxu0 0
        %1504 = vmatprep.subr.bf16.mxu0 0
        %1505 = vmatpush1.bf16.msra.mxu0 0
        %1506 = vmatprep.subr.bf16.mxu0 0
        %1507 = vmatpush1.bf16.msra.mxu0 0
        %1508 = vmatprep.subr.bf16.mxu0 0
        %1509 = vmatpush1.bf16.msra.mxu0 0
        %1510 = vmatprep.subr.bf16.mxu0 0
        %1511 = vmatpush1.bf16.msra.mxu0 0
        %1512 = vmatprep.subr.bf16.mxu0 0
        %1513 = vmatpush1.bf16.msra.mxu0 0
        %1514 = vmatprep.mubr.bf16.mxu0 0
        %1515 = vmatmul.mubr.bf16.gmra.mrb[0].mxu0 %v1432
        %v1516 = vpop.f32.mrb[0].mxu0
        %v1517 = vadd.f32 %v1426, %v1516
        %v1518 = vpop.f32.mrb[0].mxu0
        %v1519 = vpop.f32.mrb[0].mxu0
        %v1520 = vpop.f32.mrb[0].mxu0
        %1521 = vdwg.mxu0
        %1522 = vrot.lane.b32.xlu0 %v1323, 112
        %v1523 = vpop.permute.xlu0 %1522
        %1524 = vrot.lane.b32.xlu0 %v1316, 126
        %v1525 = vpop.permute.xlu0 %1524
        %1526 = vrot.lane.b32.xlu0 %v1311, 126
        %v1527 = vpop.permute.xlu0 %1526
        %1528 = vrot.lane.b32.xlu0 %v1319, 126
        %v1529 = vpop.permute.xlu0 %1528
        %v1530 = vsel %vm457, %v1525, %v1527
        %v1531 = vsel %vm457, %v1527, %v1529
        %v1533 = vsel %vm1336, %v1523, 0
        %v1536 = vsel %vm1340, %v1530, 0
        %v1539 = vsel %vm1340, %v1531, 0
        %v1542 = vsel %vm1340, %v1529, 0
        %1544 = vmatprep.subr.bf16.mxu0 %v1539
        %1545 = vmatpush1.bf16.msra.mxu0 %v1536
        %1546 = vmatprep.subr.bf16.mxu0 0
        %1547 = vmatpush1.bf16.msra.mxu0 0
        %1548 = vmatprep.subr.bf16.mxu0 0
        %1549 = vmatpush1.bf16.msra.mxu0 0
        %1550 = vmatprep.subr.bf16.mxu0 0
        %1551 = vmatpush1.bf16.msra.mxu0 0
        %1552 = vmatprep.subr.bf16.mxu0 0
        %1553 = vmatpush1.bf16.msra.mxu0 0
        %1554 = vmatprep.subr.bf16.mxu0 0
        %1555 = vmatpush1.bf16.msra.mxu0 0
        %1556 = vmatprep.subr.bf16.mxu0 0
        %1557 = vmatpush1.bf16.msra.mxu0 0
        %1558 = vmatprep.subr.bf16.mxu0 0
        %1559 = vmatpush1.bf16.msra.mxu0 0
        %1560 = vmatprep.subr.bf16.mxu0 0
        %1561 = vmatpush1.bf16.msra.mxu0 0
        %1562 = vmatprep.subr.bf16.mxu0 0
        %1563 = vmatpush1.bf16.msra.mxu0 0
        %1564 = vmatprep.subr.bf16.mxu0 0
        %1565 = vmatpush1.bf16.msra.mxu0 0
        %1566 = vmatprep.subr.bf16.mxu0 0
        %1567 = vmatpush1.bf16.msra.mxu0 0
        %1568 = vmatprep.subr.bf16.mxu0 0
        %1569 = vmatpush1.bf16.msra.mxu0 0
        %1570 = vmatprep.subr.bf16.mxu0 0
        %1571 = vmatpush1.bf16.msra.mxu0 0
        %1572 = vmatprep.subr.bf16.mxu0 0
        %1573 = vmatpush1.bf16.msra.mxu0 0
        %1574 = vmatprep.subr.bf16.mxu0 0
        %1575 = vmatpush1.bf16.msra.mxu0 0
        %1576 = vmatprep.mubr.bf16.mxu0 0
        %1577 = vmatmul.mubr.bf16.gmra.mrb[0].mxu0 %v1533
        %v1578 = vpop.f32.mrb[0].mxu0
        %v1579 = vadd.f32 0.0, %v1578
        %v1580 = vpop.f32.mrb[0].mxu0
        %v1581 = vadd.f32 0.0, %v1580
        %v1582 = vpop.f32.mrb[0].mxu0
        %v1583 = vpop.f32.mrb[0].mxu0
        %1584 = vdwg.mxu0
        %1585 = vmatprep.subr.bf16.mxu0 0
        %1586 = vmatpush1.bf16.msra.mxu0 %v1542
        %1587 = vmatprep.subr.bf16.mxu0 0
        %1588 = vmatpush1.bf16.msra.mxu0 0
        %1589 = vmatprep.subr.bf16.mxu0 0
        %1590 = vmatpush1.bf16.msra.mxu0 0
        %1591 = vmatprep.subr.bf16.mxu0 0
        %1592 = vmatpush1.bf16.msra.mxu0 0
        %1593 = vmatprep.subr.bf16.mxu0 0
        %1594 = vmatpush1.bf16.msra.mxu0 0
        %1595 = vmatprep.subr.bf16.mxu0 0
        %1596 = vmatpush1.bf16.msra.mxu0 0
        %1597 = vmatprep.subr.bf16.mxu0 0
        %1598 = vmatpush1.bf16.msra.mxu0 0
        %1599 = vmatprep.subr.bf16.mxu0 0
        %1600 = vmatpush1.bf16.msra.mxu0 0
        %1601 = vmatprep.subr.bf16.mxu0 0
        %1602 = vmatpush1.bf16.msra.mxu0 0
        %1603 = vmatprep.subr.bf16.mxu0 0
        %1604 = vmatpush1.bf16.msra.mxu0 0
        %1605 = vmatprep.subr.bf16.mxu0 0
        %1606 = vmatpush1.bf16.msra.mxu0 0
        %1607 = vmatprep.subr.bf16.mxu0 0
        %1608 = vmatpush1.bf16.msra.mxu0 0
        %1609 = vmatprep.subr.bf16.mxu0 0
        %1610 = vmatpush1.bf16.msra.mxu0 0
        %1611 = vmatprep.subr.bf16.mxu0 0
        %1612 = vmatpush1.bf16.msra.mxu0 0
        %1613 = vmatprep.subr.bf16.mxu0 0
        %1614 = vmatpush1.bf16.msra.mxu0 0
        %1615 = vmatprep.subr.bf16.mxu0 0
        %1616 = vmatpush1.bf16.msra.mxu0 0
        %1617 = vmatprep.mubr.bf16.mxu0 0
        %1618 = vmatmul.mubr.bf16.gmra.mrb[0].mxu0 %v1533
        %v1619 = vpop.f32.mrb[0].mxu0
        %v1620 = vadd.f32 0.0, %v1619
        %v1621 = vpop.f32.mrb[0].mxu0
        %v1622 = vpop.f32.mrb[0].mxu0
        %v1623 = vpop.f32.mrb[0].mxu0
        %1624 = vdwg.mxu0
        %v1625 = vadd.f32 %v1476, %v1579
        %v1626 = vadd.f32 %v1478, %v1581
        %v1627 = vadd.f32 %v1517, %v1620
        %1628 = vrot.lane.b32.xlu0 %v1323, 104
        %v1629 = vpop.permute.xlu0 %1628
        %1630 = vrot.lane.b32.xlu0 %v1316, 110
        %v1631 = vpop.permute.xlu0 %1630
        %1632 = vrot.lane.b32.xlu0 %v1311, 110
        %v1633 = vpop.permute.xlu0 %1632
        %1634 = vrot.lane.b32.xlu0 %v1319, 110
        %v1635 = vpop.permute.xlu0 %1634
        %v1636 = vsel %vm568, %v1631, %v1633
        %v1637 = vsel %vm568, %v1633, %v1635
        %v1639 = vsel %vm1336, %v1629, 0
        %v1642 = vsel %vm1340, %v1636, 0
        %v1645 = vsel %vm1340, %v1637, 0
        %v1648 = vsel %vm1340, %v1635, 0
        %1650 = vmatprep.subr.bf16.mxu0 %v1645
        %1651 = vmatpush1.bf16.msra.mxu0 %v1642
        %1652 = vmatprep.subr.bf16.mxu0 0
        %1653 = vmatpush1.bf16.msra.mxu0 0
        %1654 = vmatprep.subr.bf16.mxu0 0
        %1655 = vmatpush1.bf16.msra.mxu0 0
        %1656 = vmatprep.subr.bf16.mxu0 0
        %1657 = vmatpush1.bf16.msra.mxu0 0
        %1658 = vmatprep.subr.bf16.mxu0 0
        %1659 = vmatpush1.bf16.msra.mxu0 0
        %1660 = vmatprep.subr.bf16.mxu0 0
        %1661 = vmatpush1.bf16.msra.mxu0 0
        %1662 = vmatprep.subr.bf16.mxu0 0
        %1663 = vmatpush1.bf16.msra.mxu0 0
        %1664 = vmatprep.subr.bf16.mxu0 0
        %1665 = vmatpush1.bf16.msra.mxu0 0
        %1666 = vmatprep.subr.bf16.mxu0 0
        %1667 = vmatpush1.bf16.msra.mxu0 0
        %1668 = vmatprep.subr.bf16.mxu0 0
        %1669 = vmatpush1.bf16.msra.mxu0 0
        %1670 = vmatprep.subr.bf16.mxu0 0
        %1671 = vmatpush1.bf16.msra.mxu0 0
        %1672 = vmatprep.subr.bf16.mxu0 0
        %1673 = vmatpush1.bf16.msra.mxu0 0
        %1674 = vmatprep.subr.bf16.mxu0 0
        %1675 = vmatpush1.bf16.msra.mxu0 0
        %1676 = vmatprep.subr.bf16.mxu0 0
        %1677 = vmatpush1.bf16.msra.mxu0 0
        %1678 = vmatprep.subr.bf16.mxu0 0
        %1679 = vmatpush1.bf16.msra.mxu0 0
        %1680 = vmatprep.subr.bf16.mxu0 0
        %1681 = vmatpush1.bf16.msra.mxu0 0
        %1682 = vmatprep.mubr.bf16.mxu0 0
        %1683 = vmatmul.mubr.bf16.gmra.mrb[0].mxu0 %v1639
        %v1684 = vpop.f32.mrb[0].mxu0
        %v1685 = vadd.f32 0.0, %v1684
        %v1686 = vpop.f32.mrb[0].mxu0
        %v1687 = vadd.f32 0.0, %v1686
        %v1688 = vpop.f32.mrb[0].mxu0
        %v1689 = vpop.f32.mrb[0].mxu0
        %1690 = vdwg.mxu0
        %1691 = vmatprep.subr.bf16.mxu0 0
        %1692 = vmatpush1.bf16.msra.mxu0 %v1648
        %1693 = vmatprep.subr.bf16.mxu0 0
        %1694 = vmatpush1.bf16.msra.mxu0 0
        %1695 = vmatprep.subr.bf16.mxu0 0
        %1696 = vmatpush1.bf16.msra.mxu0 0
        %1697 = vmatprep.subr.bf16.mxu0 0
        %1698 = vmatpush1.bf16.msra.mxu0 0
        %1699 = vmatprep.subr.bf16.mxu0 0
        %1700 = vmatpush1.bf16.msra.mxu0 0
        %1701 = vmatprep.subr.bf16.mxu0 0
        %1702 = vmatpush1.bf16.msra.mxu0 0
        %1703 = vmatprep.subr.bf16.mxu0 0
        %1704 = vmatpush1.bf16.msra.mxu0 0
        %1705 = vmatprep.subr.bf16.mxu0 0
        %1706 = vmatpush1.bf16.msra.mxu0 0
        %1707 = vmatprep.subr.bf16.mxu0 0
        %1708 = vmatpush1.bf16.msra.mxu0 0
        %1709 = vmatprep.subr.bf16.mxu0 0
        %1710 = vmatpush1.bf16.msra.mxu0 0
        %1711 = vmatprep.subr.bf16.mxu0 0
        %1712 = vmatpush1.bf16.msra.mxu0 0
        %1713 = vmatprep.subr.bf16.mxu0 0
        %1714 = vmatpush1.bf16.msra.mxu0 0
        %1715 = vmatprep.subr.bf16.mxu0 0
        %1716 = vmatpush1.bf16.msra.mxu0 0
        %1717 = vmatprep.subr.bf16.mxu0 0
        %1718 = vmatpush1.bf16.msra.mxu0 0
        %1719 = vmatprep.subr.bf16.mxu0 0
        %1720 = vmatpush1.bf16.msra.mxu0 0
        %1721 = vmatprep.subr.bf16.mxu0 0
        %1722 = vmatpush1.bf16.msra.mxu0 0
        %1723 = vmatprep.mubr.bf16.mxu0 0
        %1724 = vmatmul.mubr.bf16.gmra.mrb[0].mxu0 %v1639
        %v1725 = vpop.f32.mrb[0].mxu0
        %v1726 = vadd.f32 0.0, %v1725
        %v1727 = vpop.f32.mrb[0].mxu0
        %v1728 = vpop.f32.mrb[0].mxu0
        %v1729 = vpop.f32.mrb[0].mxu0
        %1730 = vdwg.mxu0
        %v1731 = vadd.f32 %v1625, %v1685
        %v1732 = vadd.f32 %v1626, %v1687
        %v1733 = vadd.f32 %v1627, %v1726
        %1734 = vrot.lane.b32.xlu0 %v1323, 96
        %v1735 = vpop.permute.xlu0 %1734
        %1736 = vrot.lane.b32.xlu0 %v1316, 109
        %v1737 = vpop.permute.xlu0 %1736
        %1738 = vrot.lane.b32.xlu0 %v1311, 109
        %v1739 = vpop.permute.xlu0 %1738
        %1740 = vrot.lane.b32.xlu0 %v1319, 109
        %v1741 = vpop.permute.xlu0 %1740
        %v1742 = vsel %vm679, %v1737, %v1739
        %v1743 = vsel %vm679, %v1739, %v1741
        %v1745 = vsel %vm1336, %v1735, 0
        %v1748 = vsel %vm1340, %v1742, 0
        %v1751 = vsel %vm1340, %v1743, 0
        %v1754 = vsel %vm1340, %v1741, 0
        %1756 = vmatprep.subr.bf16.mxu0 %v1751
        %1757 = vmatpush1.bf16.msra.mxu0 %v1748
        %1758 = vmatprep.subr.bf16.mxu0 0
        %1759 = vmatpush1.bf16.msra.mxu0 0
        %1760 = vmatprep.subr.bf16.mxu0 0
        %1761 = vmatpush1.bf16.msra.mxu0 0
        %1762 = vmatprep.subr.bf16.mxu0 0
        %1763 = vmatpush1.bf16.msra.mxu0 0
        %1764 = vmatprep.subr.bf16.mxu0 0
        %1765 = vmatpush1.bf16.msra.mxu0 0
        %1766 = vmatprep.subr.bf16.mxu0 0
        %1767 = vmatpush1.bf16.msra.mxu0 0
        %1768 = vmatprep.subr.bf16.mxu0 0
        %1769 = vmatpush1.bf16.msra.mxu0 0
        %1770 = vmatprep.subr.bf16.mxu0 0
        %1771 = vmatpush1.bf16.msra.mxu0 0
        %1772 = vmatprep.subr.bf16.mxu0 0
        %1773 = vmatpush1.bf16.msra.mxu0 0
        %1774 = vmatprep.subr.bf16.mxu0 0
        %1775 = vmatpush1.bf16.msra.mxu0 0
        %1776 = vmatprep.subr.bf16.mxu0 0
        %1777 = vmatpush1.bf16.msra.mxu0 0
        %1778 = vmatprep.subr.bf16.mxu0 0
        %1779 = vmatpush1.bf16.msra.mxu0 0
        %1780 = vmatprep.subr.bf16.mxu0 0
        %1781 = vmatpush1.bf16.msra.mxu0 0
        %1782 = vmatprep.subr.bf16.mxu0 0
        %1783 = vmatpush1.bf16.msra.mxu0 0
        %1784 = vmatprep.subr.bf16.mxu0 0
        %1785 = vmatpush1.bf16.msra.mxu0 0
        %1786 = vmatprep.subr.bf16.mxu0 0
        %1787 = vmatpush1.bf16.msra.mxu0 0
        %1788 = vmatprep.mubr.bf16.mxu0 0
        %1789 = vmatmul.mubr.bf16.gmra.mrb[0].mxu0 %v1745
        %v1790 = vpop.f32.mrb[0].mxu0
        %v1791 = vadd.f32 0.0, %v1790
        %v1792 = vpop.f32.mrb[0].mxu0
        %v1793 = vadd.f32 0.0, %v1792
        %v1794 = vpop.f32.mrb[0].mxu0
        %v1795 = vpop.f32.mrb[0].mxu0
        %1796 = vdwg.mxu0
        %1797 = vmatprep.subr.bf16.mxu0 0
        %1798 = vmatpush1.bf16.msra.mxu0 %v1754
        %1799 = vmatprep.subr.bf16.mxu0 0
        %1800 = vmatpush1.bf16.msra.mxu0 0
        %1801 = vmatprep.subr.bf16.mxu0 0
        %1802 = vmatpush1.bf16.msra.mxu0 0
        %1803 = vmatprep.subr.bf16.mxu0 0
        %1804 = vmatpush1.bf16.msra.mxu0 0
        %1805 = vmatprep.subr.bf16.mxu0 0
        %1806 = vmatpush1.bf16.msra.mxu0 0
        %1807 = vmatprep.subr.bf16.mxu0 0
        %1808 = vmatpush1.bf16.msra.mxu0 0
        %1809 = vmatprep.subr.bf16.mxu0 0
        %1810 = vmatpush1.bf16.msra.mxu0 0
        %1811 = vmatprep.subr.bf16.mxu0 0
        %1812 = vmatpush1.bf16.msra.mxu0 0
        %1813 = vmatprep.subr.bf16.mxu0 0
        %1814 = vmatpush1.bf16.msra.mxu0 0
        %1815 = vmatprep.subr.bf16.mxu0 0
        %1816 = vmatpush1.bf16.msra.mxu0 0
        %1817 = vmatprep.subr.bf16.mxu0 0
        %1818 = vmatpush1.bf16.msra.mxu0 0
        %1819 = vmatprep.subr.bf16.mxu0 0
        %1820 = vmatpush1.bf16.msra.mxu0 0
        %1821 = vmatprep.subr.bf16.mxu0 0
        %1822 = vmatpush1.bf16.msra.mxu0 0
        %1823 = vmatprep.subr.bf16.mxu0 0
        %1824 = vmatpush1.bf16.msra.mxu0 0
        %1825 = vmatprep.subr.bf16.mxu0 0
        %1826 = vmatpush1.bf16.msra.mxu0 0
        %1827 = vmatprep.subr.bf16.mxu0 0
        %1828 = vmatpush1.bf16.msra.mxu0 0
        %1829 = vmatprep.mubr.bf16.mxu0 0
        %1830 = vmatmul.mubr.bf16.gmra.mrb[0].mxu0 %v1745
        %v1831 = vpop.f32.mrb[0].mxu0
        %v1832 = vadd.f32 0.0, %v1831
        %v1833 = vpop.f32.mrb[0].mxu0
        %v1834 = vpop.f32.mrb[0].mxu0
        %v1835 = vpop.f32.mrb[0].mxu0
        %1836 = vdwg.mxu0
        %v1837 = vadd.f32 %v1731, %v1791
        %v1838 = vadd.f32 %v1732, %v1793
        %v1839 = vadd.f32 %v1733, %v1832
        %1840 = vrot.lane.b32.xlu0 %v1323, 88
        %v1841 = vpop.permute.xlu0 %1840
        %1842 = vrot.lane.b32.xlu0 %v1316, 108
        %v1843 = vpop.permute.xlu0 %1842
        %1844 = vrot.lane.b32.xlu0 %v1311, 108
        %v1845 = vpop.permute.xlu0 %1844
        %1846 = vrot.lane.b32.xlu0 %v1319, 108
        %v1847 = vpop.permute.xlu0 %1846
        %v1848 = vsel %vm790, %v1843, %v1845
        %v1849 = vsel %vm790, %v1845, %v1847
        %v1851 = vsel %vm1336, %v1841, 0
        %v1854 = vsel %vm1340, %v1848, 0
        %v1857 = vsel %vm1340, %v1849, 0
        %v1860 = vsel %vm1340, %v1847, 0
        %1862 = vmatprep.subr.bf16.mxu0 %v1857
        %1863 = vmatpush1.bf16.msra.mxu0 %v1854
        %1864 = vmatprep.subr.bf16.mxu0 0
        %1865 = vmatpush1.bf16.msra.mxu0 0
        %1866 = vmatprep.subr.bf16.mxu0 0
        %1867 = vmatpush1.bf16.msra.mxu0 0
        %1868 = vmatprep.subr.bf16.mxu0 0
        %1869 = vmatpush1.bf16.msra.mxu0 0
        %1870 = vmatprep.subr.bf16.mxu0 0
        %1871 = vmatpush1.bf16.msra.mxu0 0
        %1872 = vmatprep.subr.bf16.mxu0 0
        %1873 = vmatpush1.bf16.msra.mxu0 0
        %1874 = vmatprep.subr.bf16.mxu0 0
        %1875 = vmatpush1.bf16.msra.mxu0 0
        %1876 = vmatprep.subr.bf16.mxu0 0
        %1877 = vmatpush1.bf16.msra.mxu0 0
        %1878 = vmatprep.subr.bf16.mxu0 0
        %1879 = vmatpush1.bf16.msra.mxu0 0
        %1880 = vmatprep.subr.bf16.mxu0 0
        %1881 = vmatpush1.bf16.msra.mxu0 0
        %1882 = vmatprep.subr.bf16.mxu0 0
        %1883 = vmatpush1.bf16.msra.mxu0 0
        %1884 = vmatprep.subr.bf16.mxu0 0
        %1885 = vmatpush1.bf16.msra.mxu0 0
        %1886 = vmatprep.subr.bf16.mxu0 0
        %1887 = vmatpush1.bf16.msra.mxu0 0
        %1888 = vmatprep.subr.bf16.mxu0 0
        %1889 = vmatpush1.bf16.msra.mxu0 0
        %1890 = vmatprep.subr.bf16.mxu0 0
        %1891 = vmatpush1.bf16.msra.mxu0 0
        %1892 = vmatprep.subr.bf16.mxu0 0
        %1893 = vmatpush1.bf16.msra.mxu0 0
        %1894 = vmatprep.mubr.bf16.mxu0 0
        %1895 = vmatmul.mubr.bf16.gmra.mrb[0].mxu0 %v1851
        %v1896 = vpop.f32.mrb[0].mxu0
        %v1897 = vadd.f32 0.0, %v1896
        %v1898 = vpop.f32.mrb[0].mxu0
        %v1899 = vadd.f32 0.0, %v1898
        %v1900 = vpop.f32.mrb[0].mxu0
        %v1901 = vpop.f32.mrb[0].mxu0
        %1902 = vdwg.mxu0
        %1903 = vmatprep.subr.bf16.mxu0 0
        %1904 = vmatpush1.bf16.msra.mxu0 %v1860
        %1905 = vmatprep.subr.bf16.mxu0 0
        %1906 = vmatpush1.bf16.msra.mxu0 0
        %1907 = vmatprep.subr.bf16.mxu0 0
        %1908 = vmatpush1.bf16.msra.mxu0 0
        %1909 = vmatprep.subr.bf16.mxu0 0
        %1910 = vmatpush1.bf16.msra.mxu0 0
        %1911 = vmatprep.subr.bf16.mxu0 0
        %1912 = vmatpush1.bf16.msra.mxu0 0
        %1913 = vmatprep.subr.bf16.mxu0 0
        %1914 = vmatpush1.bf16.msra.mxu0 0
        %1915 = vmatprep.subr.bf16.mxu0 0
        %1916 = vmatpush1.bf16.msra.mxu0 0
        %1917 = vmatprep.subr.bf16.mxu0 0
        %1918 = vmatpush1.bf16.msra.mxu0 0
        %1919 = vmatprep.subr.bf16.mxu0 0
        %1920 = vmatpush1.bf16.msra.mxu0 0
        %1921 = vmatprep.subr.bf16.mxu0 0
        %1922 = vmatpush1.bf16.msra.mxu0 0
        %1923 = vmatprep.subr.bf16.mxu0 0
        %1924 = vmatpush1.bf16.msra.mxu0 0
        %1925 = vmatprep.subr.bf16.mxu0 0
        %1926 = vmatpush1.bf16.msra.mxu0 0
        %1927 = vmatprep.subr.bf16.mxu0 0
        %1928 = vmatpush1.bf16.msra.mxu0 0
        %1929 = vmatprep.subr.bf16.mxu0 0
        %1930 = vmatpush1.bf16.msra.mxu0 0
        %1931 = vmatprep.subr.bf16.mxu0 0
        %1932 = vmatpush1.bf16.msra.mxu0 0
        %1933 = vmatprep.subr.bf16.mxu0 0
        %1934 = vmatpush1.bf16.msra.mxu0 0
        %1935 = vmatprep.mubr.bf16.mxu0 0
        %1936 = vmatmul.mubr.bf16.gmra.mrb[0].mxu0 %v1851
        %v1937 = vpop.f32.mrb[0].mxu0
        %v1938 = vadd.f32 0.0, %v1937
        %v1939 = vpop.f32.mrb[0].mxu0
        %v1940 = vpop.f32.mrb[0].mxu0
        %v1941 = vpop.f32.mrb[0].mxu0
        %1942 = vdwg.mxu0
        %v1943 = vadd.f32 %v1837, %v1897
        %v1944 = vadd.f32 %v1838, %v1899
        %v1945 = vadd.f32 %v1839, %v1938
        %1946 = vrot.lane.b32.xlu0 %v1323, 80
        %v1947 = vpop.permute.xlu0 %1946
        %1948 = vrot.lane.b32.xlu0 %v1316, 92
        %v1949 = vpop.permute.xlu0 %1948
        %1950 = vrot.lane.b32.xlu0 %v1311, 92
        %v1951 = vpop.permute.xlu0 %1950
        %1952 = vrot.lane.b32.xlu0 %v1319, 92
        %v1953 = vpop.permute.xlu0 %1952
        %v1954 = vsel %vm901, %v1949, %v1951
        %v1955 = vsel %vm901, %v1951, %v1953
        %v1957 = vsel %vm1336, %v1947, 0
        %v1960 = vsel %vm1340, %v1954, 0
        %v1963 = vsel %vm1340, %v1955, 0
        %v1966 = vsel %vm1340, %v1953, 0
        %1968 = vmatprep.subr.bf16.mxu0 %v1963
        %1969 = vmatpush1.bf16.msra.mxu0 %v1960
        %1970 = vmatprep.subr.bf16.mxu0 0
        %1971 = vmatpush1.bf16.msra.mxu0 0
        %1972 = vmatprep.subr.bf16.mxu0 0
        %1973 = vmatpush1.bf16.msra.mxu0 0
        %1974 = vmatprep.subr.bf16.mxu0 0
        %1975 = vmatpush1.bf16.msra.mxu0 0
        %1976 = vmatprep.subr.bf16.mxu0 0
        %1977 = vmatpush1.bf16.msra.mxu0 0
        %1978 = vmatprep.subr.bf16.mxu0 0
        %1979 = vmatpush1.bf16.msra.mxu0 0
        %1980 = vmatprep.subr.bf16.mxu0 0
        %1981 = vmatpush1.bf16.msra.mxu0 0
        %1982 = vmatprep.subr.bf16.mxu0 0
        %1983 = vmatpush1.bf16.msra.mxu0 0
        %1984 = vmatprep.subr.bf16.mxu0 0
        %1985 = vmatpush1.bf16.msra.mxu0 0
        %1986 = vmatprep.subr.bf16.mxu0 0
        %1987 = vmatpush1.bf16.msra.mxu0 0
        %1988 = vmatprep.subr.bf16.mxu0 0
        %1989 = vmatpush1.bf16.msra.mxu0 0
        %1990 = vmatprep.subr.bf16.mxu0 0
        %1991 = vmatpush1.bf16.msra.mxu0 0
        %1992 = vmatprep.subr.bf16.mxu0 0
        %1993 = vmatpush1.bf16.msra.mxu0 0
        %1994 = vmatprep.subr.bf16.mxu0 0
        %1995 = vmatpush1.bf16.msra.mxu0 0
        %1996 = vmatprep.subr.bf16.mxu0 0
        %1997 = vmatpush1.bf16.msra.mxu0 0
        %1998 = vmatprep.subr.bf16.mxu0 0
        %1999 = vmatpush1.bf16.msra.mxu0 0
        %2000 = vmatprep.mubr.bf16.mxu0 0
        %2001 = vmatmul.mubr.bf16.gmra.mrb[0].mxu0 %v1957
        %v2002 = vpop.f32.mrb[0].mxu0
        %v2003 = vadd.f32 0.0, %v2002
        %v2004 = vpop.f32.mrb[0].mxu0
        %v2005 = vadd.f32 0.0, %v2004
        %v2006 = vpop.f32.mrb[0].mxu0
        %v2007 = vpop.f32.mrb[0].mxu0
        %2008 = vdwg.mxu0
        %2009 = vmatprep.subr.bf16.mxu0 0
        %2010 = vmatpush1.bf16.msra.mxu0 %v1966
        %2011 = vmatprep.subr.bf16.mxu0 0
        %2012 = vmatpush1.bf16.msra.mxu0 0
        %2013 = vmatprep.subr.bf16.mxu0 0
        %2014 = vmatpush1.bf16.msra.mxu0 0
        %2015 = vmatprep.subr.bf16.mxu0 0
        %2016 = vmatpush1.bf16.msra.mxu0 0
        %2017 = vmatprep.subr.bf16.mxu0 0
        %2018 = vmatpush1.bf16.msra.mxu0 0
        %2019 = vmatprep.subr.bf16.mxu0 0
        %2020 = vmatpush1.bf16.msra.mxu0 0
        %2021 = vmatprep.subr.bf16.mxu0 0
        %2022 = vmatpush1.bf16.msra.mxu0 0
        %2023 = vmatprep.subr.bf16.mxu0 0
        %2024 = vmatpush1.bf16.msra.mxu0 0
        %2025 = vmatprep.subr.bf16.mxu0 0
        %2026 = vmatpush1.bf16.msra.mxu0 0
        %2027 = vmatprep.subr.bf16.mxu0 0
        %2028 = vmatpush1.bf16.msra.mxu0 0
        %2029 = vmatprep.subr.bf16.mxu0 0
        %2030 = vmatpush1.bf16.msra.mxu0 0
        %2031 = vmatprep.subr.bf16.mxu0 0
        %2032 = vmatpush1.bf16.msra.mxu0 0
        %2033 = vmatprep.subr.bf16.mxu0 0
        %2034 = vmatpush1.bf16.msra.mxu0 0
        %2035 = vmatprep.subr.bf16.mxu0 0
        %2036 = vmatpush1.bf16.msra.mxu0 0
        %2037 = vmatprep.subr.bf16.mxu0 0
        %2038 = vmatpush1.bf16.msra.mxu0 0
        %2039 = vmatprep.subr.bf16.mxu0 0
        %2040 = vmatpush1.bf16.msra.mxu0 0
        %2041 = vmatprep.mubr.bf16.mxu0 0
        %2042 = vmatmul.mubr.bf16.gmra.mrb[0].mxu0 %v1957
        %v2043 = vpop.f32.mrb[0].mxu0
        %v2044 = vadd.f32 0.0, %v2043
        %v2045 = vpop.f32.mrb[0].mxu0
        %v2046 = vpop.f32.mrb[0].mxu0
        %v2047 = vpop.f32.mrb[0].mxu0
        %2048 = vdwg.mxu0
        %v2049 = vadd.f32 %v1943, %v2003
        %v2050 = vadd.f32 %v1944, %v2005
        %v2051 = vadd.f32 %v1945, %v2044
        %2052 = vrot.lane.b32.xlu0 %v1323, 72
        %v2053 = vpop.permute.xlu0 %2052
        %2054 = vrot.lane.b32.xlu0 %v1316, 91
        %v2055 = vpop.permute.xlu0 %2054
        %2056 = vrot.lane.b32.xlu0 %v1311, 91
        %v2057 = vpop.permute.xlu0 %2056
        %2058 = vrot.lane.b32.xlu0 %v1319, 91
        %v2059 = vpop.permute.xlu0 %2058
        %v2060 = vsel %vm1012, %v2055, %v2057
        %v2061 = vsel %vm1012, %v2057, %v2059
        %v2063 = vsel %vm1336, %v2053, 0
        %v2066 = vsel %vm1340, %v2060, 0
        %v2069 = vsel %vm1340, %v2061, 0
        %v2072 = vsel %vm1340, %v2059, 0
        %2074 = vmatprep.subr.bf16.mxu0 %v2069
        %2075 = vmatpush1.bf16.msra.mxu0 %v2066
        %2076 = vmatprep.subr.bf16.mxu0 0
        %2077 = vmatpush1.bf16.msra.mxu0 0
        %2078 = vmatprep.subr.bf16.mxu0 0
        %2079 = vmatpush1.bf16.msra.mxu0 0
        %2080 = vmatprep.subr.bf16.mxu0 0
        %2081 = vmatpush1.bf16.msra.mxu0 0
        %2082 = vmatprep.subr.bf16.mxu0 0
        %2083 = vmatpush1.bf16.msra.mxu0 0
        %2084 = vmatprep.subr.bf16.mxu0 0
        %2085 = vmatpush1.bf16.msra.mxu0 0
        %2086 = vmatprep.subr.bf16.mxu0 0
        %2087 = vmatpush1.bf16.msra.mxu0 0
        %2088 = vmatprep.subr.bf16.mxu0 0
        %2089 = vmatpush1.bf16.msra.mxu0 0
        %2090 = vmatprep.subr.bf16.mxu0 0
        %2091 = vmatpush1.bf16.msra.mxu0 0
        %2092 = vmatprep.subr.bf16.mxu0 0
        %2093 = vmatpush1.bf16.msra.mxu0 0
        %2094 = vmatprep.subr.bf16.mxu0 0
        %2095 = vmatpush1.bf16.msra.mxu0 0
        %2096 = vmatprep.subr.bf16.mxu0 0
        %2097 = vmatpush1.bf16.msra.mxu0 0
        %2098 = vmatprep.subr.bf16.mxu0 0
        %2099 = vmatpush1.bf16.msra.mxu0 0
        %2100 = vmatprep.subr.bf16.mxu0 0
        %2101 = vmatpush1.bf16.msra.mxu0 0
        %2102 = vmatprep.subr.bf16.mxu0 0
        %2103 = vmatpush1.bf16.msra.mxu0 0
        %2104 = vmatprep.subr.bf16.mxu0 0
        %2105 = vmatpush1.bf16.msra.mxu0 0
        %2106 = vmatprep.mubr.bf16.mxu0 0
        %2107 = vmatmul.mubr.bf16.gmra.mrb[0].mxu0 %v2063
        %v2108 = vpop.f32.mrb[0].mxu0
        %v2109 = vadd.f32 0.0, %v2108
        %v2110 = vpop.f32.mrb[0].mxu0
        %v2111 = vadd.f32 0.0, %v2110
        %v2112 = vpop.f32.mrb[0].mxu0
        %v2113 = vpop.f32.mrb[0].mxu0
        %2114 = vdwg.mxu0
        %2115 = vmatprep.subr.bf16.mxu0 0
        %2116 = vmatpush1.bf16.msra.mxu0 %v2072
        %2117 = vmatprep.subr.bf16.mxu0 0
        %2118 = vmatpush1.bf16.msra.mxu0 0
        %2119 = vmatprep.subr.bf16.mxu0 0
        %2120 = vmatpush1.bf16.msra.mxu0 0
        %2121 = vmatprep.subr.bf16.mxu0 0
        %2122 = vmatpush1.bf16.msra.mxu0 0
        %2123 = vmatprep.subr.bf16.mxu0 0
        %2124 = vmatpush1.bf16.msra.mxu0 0
        %2125 = vmatprep.subr.bf16.mxu0 0
        %2126 = vmatpush1.bf16.msra.mxu0 0
        %2127 = vmatprep.subr.bf16.mxu0 0
        %2128 = vmatpush1.bf16.msra.mxu0 0
        %2129 = vmatprep.subr.bf16.mxu0 0
        %2130 = vmatpush1.bf16.msra.mxu0 0
        %2131 = vmatprep.subr.bf16.mxu0 0
        %2132 = vmatpush1.bf16.msra.mxu0 0
        %2133 = vmatprep.subr.bf16.mxu0 0
        %2134 = vmatpush1.bf16.msra.mxu0 0
        %2135 = vmatprep.subr.bf16.mxu0 0
        %2136 = vmatpush1.bf16.msra.mxu0 0
        %2137 = vmatprep.subr.bf16.mxu0 0
        %2138 = vmatpush1.bf16.msra.mxu0 0
        %2139 = vmatprep.subr.bf16.mxu0 0
        %2140 = vmatpush1.bf16.msra.mxu0 0
        %2141 = vmatprep.subr.bf16.mxu0 0
        %2142 = vmatpush1.bf16.msra.mxu0 0
        %2143 = vmatprep.subr.bf16.mxu0 0
        %2144 = vmatpush1.bf16.msra.mxu0 0
        %2145 = vmatprep.subr.bf16.mxu0 0
        %2146 = vmatpush1.bf16.msra.mxu0 0
        %2147 = vmatprep.mubr.bf16.mxu0 0
        %2148 = vmatmul.mubr.bf16.gmra.mrb[0].mxu0 %v2063
        %v2149 = vpop.f32.mrb[0].mxu0
        %v2150 = vadd.f32 0.0, %v2149
        %v2151 = vpop.f32.mrb[0].mxu0
        %v2152 = vpop.f32.mrb[0].mxu0
        %v2153 = vpop.f32.mrb[0].mxu0
        %2154 = vdwg.mxu0
        %v2155 = vadd.f32 %v2049, %v2109
        %v2156 = vadd.f32 %v2050, %v2111
        %v2157 = vadd.f32 %v2051, %v2150
        %2158 = vrot.lane.b32.xlu0 %v1323, 64
        %v2159 = vpop.permute.xlu0 %2158
        %2160 = vrot.lane.b32.xlu0 %v1316, 90
        %v2161 = vpop.permute.xlu0 %2160
        %2162 = vrot.lane.b32.xlu0 %v1311, 90
        %v2163 = vpop.permute.xlu0 %2162
        %2164 = vrot.lane.b32.xlu0 %v1319, 90
        %v2165 = vpop.permute.xlu0 %2164
        %v2166 = vsel %vm1123, %v2161, %v2163
        %v2167 = vsel %vm1123, %v2163, %v2165
        %v2169 = vsel %vm1336, %v2159, 0
        %v2172 = vsel %vm1340, %v2166, 0
        %v2175 = vsel %vm1340, %v2167, 0
        %v2178 = vsel %vm1340, %v2165, 0
        %2180 = vmatprep.subr.bf16.mxu0 %v2175
        %2181 = vmatpush1.bf16.msra.mxu0 %v2172
        %2182 = vmatprep.subr.bf16.mxu0 0
        %2183 = vmatpush1.bf16.msra.mxu0 0
        %2184 = vmatprep.subr.bf16.mxu0 0
        %2185 = vmatpush1.bf16.msra.mxu0 0
        %2186 = vmatprep.subr.bf16.mxu0 0
        %2187 = vmatpush1.bf16.msra.mxu0 0
        %2188 = vmatprep.subr.bf16.mxu0 0
        %2189 = vmatpush1.bf16.msra.mxu0 0
        %2190 = vmatprep.subr.bf16.mxu0 0
        %2191 = vmatpush1.bf16.msra.mxu0 0
        %2192 = vmatprep.subr.bf16.mxu0 0
        %2193 = vmatpush1.bf16.msra.mxu0 0
        %2194 = vmatprep.subr.bf16.mxu0 0
        %2195 = vmatpush1.bf16.msra.mxu0 0
        %2196 = vmatprep.subr.bf16.mxu0 0
        %2197 = vmatpush1.bf16.msra.mxu0 0
        %2198 = vmatprep.subr.bf16.mxu0 0
        %2199 = vmatpush1.bf16.msra.mxu0 0
        %2200 = vmatprep.subr.bf16.mxu0 0
        %2201 = vmatpush1.bf16.msra.mxu0 0
        %2202 = vmatprep.subr.bf16.mxu0 0
        %2203 = vmatpush1.bf16.msra.mxu0 0
        %2204 = vmatprep.subr.bf16.mxu0 0
        %2205 = vmatpush1.bf16.msra.mxu0 0
        %2206 = vmatprep.subr.bf16.mxu0 0
        %2207 = vmatpush1.bf16.msra.mxu0 0
        %2208 = vmatprep.subr.bf16.mxu0 0
        %2209 = vmatpush1.bf16.msra.mxu0 0
        %2210 = vmatprep.subr.bf16.mxu0 0
        %2211 = vmatpush1.bf16.msra.mxu0 0
        %2212 = vmatprep.mubr.bf16.mxu0 0
        %2213 = vmatmul.mubr.bf16.gmra.mrb[0].mxu0 %v2169
        %v2214 = vpop.f32.mrb[0].mxu0
        %v2215 = vadd.f32 0.0, %v2214
        %v2216 = vpop.f32.mrb[0].mxu0
        %v2217 = vadd.f32 0.0, %v2216
        %v2218 = vpop.f32.mrb[0].mxu0
        %v2219 = vpop.f32.mrb[0].mxu0
        %2220 = vdwg.mxu0
        %2221 = vmatprep.subr.bf16.mxu0 0
        %2222 = vmatpush1.bf16.msra.mxu0 %v2178
        %2223 = vmatprep.subr.bf16.mxu0 0
        %2224 = vmatpush1.bf16.msra.mxu0 0
        %2225 = vmatprep.subr.bf16.mxu0 0
        %2226 = vmatpush1.bf16.msra.mxu0 0
        %2227 = vmatprep.subr.bf16.mxu0 0
        %2228 = vmatpush1.bf16.msra.mxu0 0
        %2229 = vmatprep.subr.bf16.mxu0 0
        %2230 = vmatpush1.bf16.msra.mxu0 0
        %2231 = vmatprep.subr.bf16.mxu0 0
        %2232 = vmatpush1.bf16.msra.mxu0 0
        %2233 = vmatprep.subr.bf16.mxu0 0
        %2234 = vmatpush1.bf16.msra.mxu0 0
        %2235 = vmatprep.subr.bf16.mxu0 0
        %2236 = vmatpush1.bf16.msra.mxu0 0
        %2237 = vmatprep.subr.bf16.mxu0 0
        %2238 = vmatpush1.bf16.msra.mxu0 0
        %2239 = vmatprep.subr.bf16.mxu0 0
        %2240 = vmatpush1.bf16.msra.mxu0 0
        %2241 = vmatprep.subr.bf16.mxu0 0
        %2242 = vmatpush1.bf16.msra.mxu0 0
        %2243 = vmatprep.subr.bf16.mxu0 0
        %2244 = vmatpush1.bf16.msra.mxu0 0
        %2245 = vmatprep.subr.bf16.mxu0 0
        %2246 = vmatpush1.bf16.msra.mxu0 0
        %2247 = vmatprep.subr.bf16.mxu0 0
        %2248 = vmatpush1.bf16.msra.mxu0 0
        %2249 = vmatprep.subr.bf16.mxu0 0
        %2250 = vmatpush1.bf16.msra.mxu0 0
        %2251 = vmatprep.subr.bf16.mxu0 0
        %2252 = vmatpush1.bf16.msra.mxu0 0
        %2253 = vmatprep.mubr.bf16.mxu0 0
        %2254 = vmatmul.mubr.bf16.gmra.mrb[0].mxu0 %v2169
        %v2255 = vpop.f32.mrb[0].mxu0
        %v2256 = vadd.f32 0.0, %v2255
        %v2257 = vpop.f32.mrb[0].mxu0
        %v2258 = vpop.f32.mrb[0].mxu0
        %v2259 = vpop.f32.mrb[0].mxu0
        %2260 = vdwg.mxu0
        %v2261 = vadd.f32 %v2155, %v2215
        %v2262 = vadd.f32 %v2156, %v2217
        %v2263 = vadd.f32 %v2157, %v2256
        %v2264 = vld [vmem:[%s4] sm:$0xff]
        %2266 = vset.pattern.permute.xlu0 0
        %2267 = vperm.xlu0 %2266, %v2264
        %v2268 = vpop.permute.xlu0 %2267
        %v2270 = vadd.f32 %v2261, %v2268
        %v2271 = vadd.f32 %v2262, %v2268
        %v2272 = vadd.f32 %v2263, %v2268
        %v2273 = vmax.f32 %v2270, 0.0
        %v2274 = vmax.f32 %v2271, 0.0
        %v2275 = vmax.f32 %v2272, 0.0
        %v2276 = vsel %vm1292, %v2273, 0.0
        %v2277 = vsel %vm1293, %v2274, 0.0
        %v2278 = vsel %vm1294, %v2275, 0.0
        %2279 = vst [vmem:[%s217] sm:$0xff] %v2276
        %2280 = vst [vmem:[%s217 + $0x8] sm:$0xff] %v2277
        %vm2281 = vcmask 261120
        %2282 = vst.msk [vmem:[%s217 + $0x10] sm:$0xff] %vm2281, %v2278
        %s2283 = sand.u32 %s137, 1
        %s2284 = scalar_lea.sflag [#allocation3], %s2283
        %s2285 = sand.u32 %s137, 1
        %s2286 = smul.addr %s2285, 24
        %s2287 = scalar_lea.vmem [#allocation2], %s2286
        // Predicated region
        $region41: #{tpu_custom_call.1} parent=39 // pred_check
          %p2288 = pneg %p147
        $region42: #{tpu_custom_call.1} parent=39 // pred_check_branch
          %2290 = sbr.rel (%p2288) target = $region44
        $region43: #{tpu_custom_call.1} parent=39 // pred_region
          %s2292 = ssub.s32 384, 384
          %2293 = vsyncadd %s2284, %s2292
          %s2294 = smul.addr %s19, 3
          %s2295 = smul.addr %s2294, 128
          %s2296 = scalar_lea.hbm %s5, %s2295
          %s2298 = sshll.u32 %s2287, 4
          %s2299 = int_to_ptr.vmem [resolvable:$true] %s2298
          %2301 = dma.vmem_to_hbm [thread:$0]  %s2299, 384, %s2296, %s2284
        $region44: #{tpu_custom_call.1} parent=39 // pred_fallthru
          _
      $region40: #{tpu_custom_call.1} parent=5 // pred_fallthru
        _
      %p2302 = scmp.le.s32.totalorder 2, %s14
      // Predicated region
      $region45: #{tpu_custom_call.1} parent=5 // pred_check
        %p2303 = pneg %p2302
      $region46: #{tpu_custom_call.1} parent=5 // pred_check_branch
        %2305 = sbr.rel (%p2303) target = $region48
      $region47: #{tpu_custom_call.1} parent=5 // pred_region
        %s2306 = ssub.s32 %s14, 2
        // Predicated region
        $region49: #{tpu_custom_call.1} parent=47 // pred_check
          %p2307 = pneg %p153
        $region50: #{tpu_custom_call.1} parent=47 // pred_check_branch
          %2309 = sbr.rel (%p2307) target = $region52
        $region51: #{tpu_custom_call.1} parent=47 // pred_region
          %s2310 = sand.u32 %s138, 1
          %s2311 = scalar_lea.sflag [#allocation3], %s2310
          %s2312 = sand.u32 %s138, 1
          %s2313 = smul.addr %s2312, 24
          %s2314 = scalar_lea.vmem [#allocation2], %s2313
          %2315 = dma.done %s2311, 384
        $region52: #{tpu_custom_call.1} parent=47 // pred_fallthru
          _
      $region48: #{tpu_custom_call.1} parent=5 // pred_fallthru
        _
    $region6: #{tpu_custom_call.1} parent=1 // loop_footer
      %s18 = sadd.s32 1, %s14
    $region7: #{tpu_custom_call.1} parent=1 // loop_footer_branch
      %13 = sbr.rel target = $region3
    $region8: #{tpu_custom_call.1} parent=1 // loop_exit
      _
    %2316 = vsyncpa [#allocation3], 1
    %s2317 = scalar_lea.sflag [#allocation3], 1
    %2318 = vsyncpa %s2317, 1

</llo_original>
